<compile_context>
chip_gen: v6e
topology: v6e:2x2x1
jax: 0.10.0
libtpu: 0.0.40
codegen_flags: <defaults>
</compile_context>

<pallas_src>
import functools

import jax
import jax.numpy as jnp
from jax import lax
from jax.experimental import pallas as pl
from jax.experimental.pallas import tpu as pltpu


# ----------------------------------------------------------------------------
# Hardware-aware tile sizing
# ----------------------------------------------------------------------------
def _hw_config():
    """(vmem_limit_bytes, batch_tile_cap) for the local TPU generation."""
    vmem_cap = 64 << 20                      # conservative default: v7x per-TC
    try:
        vmem_cap = int(pltpu.get_tpu_info().vmem_capacity_bytes)
    except Exception:
        pass
    kind = ""
    try:
        kind = jax.devices()[0].device_kind.lower()
    except Exception:
        pass
    # v5 MXU M-dim is 128 wide; bigger batch tiles buy nothing there.
    b_cap = 128 if "v5" in kind else 256
    # Explicit scoped-VMEM limit with headroom (96 MiB on 128 MiB chips,
    # 48 MiB on v7x's 64 MiB) instead of relying on the small defaults.
    vmem_limit = int(vmem_cap * 3 // 4)
    return vmem_limit, b_cap


def _pick_b_tile(batch, b_cap, sublane):
    """Sublane-friendly batch tile; prefer >=2 tiles when the batch is big
    enough so the 'parallel' batch axis can feed v7x's second TensorCore."""
    if batch > b_cap:
        return max(sublane, (b_cap // sublane) * sublane)
    if batch >= 2 * sublane:
        half = -(-batch // 2)
        half = -(-half // sublane) * sublane
        if half < batch:
            return half
    return batch


def _pick_t_chunk(seq_len, b_tile, hidden, out_dim, cbytes, vmem_limit):
    """Largest time-chunk whose (double-buffered) gates_x block plus the
    single-buffered weights and h/c scratch fits the VMEM budget."""
    sub = 16 if cbytes == 2 else 8
    bt_pad = -(-b_tile // sub) * sub
    lane_g = -(-4 * hidden // 128) * 128
    lane_o = -(-out_dim // 128) * 128
    h_pad = -(-hidden // 8) * 8
    bt8 = -(-b_tile // 8) * 8
    fixed = (h_pad * lane_g + h_pad * lane_o) * cbytes          # W_hh, W_fc (1 buffer)
    fixed += 8 * lane_o * 4                                     # fc bias (padded)
    fixed += 2 * bt8 * (-(-hidden // 128) * 128) * 4            # h/c f32 scratch
    fixed += 2 * bt8 * lane_o * 4                               # out block (2 buffers)
    budget = max(vmem_limit - fixed, 1 << 20)
    per_step = bt_pad * lane_g * cbytes                         # one time row of gates_x
    t_chunk = int(budget * 0.6) // (2 * per_step)               # 2x: double-buffered
    return max(1, min(t_chunk, seq_len, 1024))


def _unroll_factor(n_steps, b_tile, hidden):
    """Full unroll only when per-step live state comfortably fits the 64-vreg
    file; otherwise partial unroll (8) so the LLO scheduler can overlap the
    next step's gx load / MXU push with the current step's EUP/VALU work."""
    if n_steps <= 1:
        return 1
    state_vregs = ((b_tile + 7) // 8) * ((hidden + 127) // 128)
    if n_steps <= 32 and state_vregs <= 6:
        return True
    return min(8, n_steps)


# ----------------------------------------------------------------------------
# Kernel
# ----------------------------------------------------------------------------
def lstm_predictor_kernel(gx_ref, whh_ref, wfc_ref, bfc_ref, out_ref,
                          h_ref, c_ref, *, hidden_size, t_chunk, t_rem,
                          unroll_main, unroll_rem):
    """One grid step == one (batch-tile, T-chunk) slice of the recurrence.

    gx_ref  : (t_chunk, Bt, 4H)  precomputed x @ W_ih + b (time-major chunk)
    whh_ref : (H, 4H)            hidden->gates weights (transposed weight_hh_l0)
    wfc_ref : (H, O)             final Linear weight (transposed)
    bfc_ref : (1, O)             final Linear bias (f32)
    out_ref : (Bt, O)            output (written on the last T-chunk only)
    h_ref/c_ref : (Bt, H) f32    VMEM scratch carrying LSTM state across chunks
    """
    H = hidden_size
    chunk = pl.program_id(1)
    last = pl.num_programs(1) - 1

    @pl.when(chunk == 0)
    def _():
        h_ref[...] = jnp.zeros_like(h_ref)
        c_ref[...] = jnp.zeros_like(c_ref)

    whh = whh_ref[...]          # hoisted out of the time loop (loaded once)

    def step(s, carry):
        h, c = carry
        # Only the recurrent half of the gate matmul sits on the serial path.
        # h/c state stays f32; MXU accumulation is f32 even on the bf16 path.
        gates = gx_ref[s].astype(jnp.float32) + jnp.dot(
            h.astype(whh.dtype), whh, preferred_element_type=jnp.float32)
        # Sigmoid only where it is used (i/f and o quadrants); g gets tanh.
        # For real workloads pick H as a multiple of 128 so gate slices fall on
        # lane-tile boundaries.
        if_g = jax.nn.sigmoid(gates[:, 0:2 * H])
        i_g = if_g[:, 0:H]
        f_g = if_g[:, H:2 * H]
        g_g = jnp.tanh(gates[:, 2 * H:3 * H])
        o_g = jax.nn.sigmoid(gates[:, 3 * H:4 * H])
        c = f_g * c + i_g * g_g
        h = o_g * jnp.tanh(c)
        return h, c

    def run_steps(n_steps, unroll):
        h, c = lax.fori_loop(0, n_steps, step, (h_ref[...], c_ref[...]),
                             unroll=unroll)
        h_ref[...] = h
        c_ref[...] = c

    if t_rem == 0:
        # All chunks have the same static trip count.
        run_steps(t_chunk, unroll_main)
    else:
        # Only the final chunk is ragged; every other chunk keeps the static,
        # (partially) unrolled loop.  The remainder trip count is also static.
        @pl.when(chunk != last)
        def _():
            run_steps(t_chunk, unroll_main)

        @pl.when(chunk == last)
        def _():
            run_steps(t_rem, unroll_rem)

    @pl.when(chunk == last)
    def _():
        h = h_ref[...]
        out_ref[...] = (jnp.dot(h.astype(wfc_ref.dtype), wfc_ref[...],
                                preferred_element_type=jnp.float32)
                        + bfc_ref[...].astype(jnp.float32)).astype(out_ref.dtype)


# ----------------------------------------------------------------------------
# Wrapper
# ----------------------------------------------------------------------------
def lstm_predictor_forward(x, params, *, compute_dtype=jnp.float32,
                           t_chunk=None, b_tile=None):
    """x: (B, T, I) float32 (PyTorch batch_first convention). Returns (B, O).

    compute_dtype: jnp.float32 (reference numerics) or jnp.bfloat16
    (gates_x / W_hh / W_fc in bf16, f32 state + f32 accumulation: ~2x MXU rate,
    half the VMEM tile and HBM traffic).
    """
    B, T, I = x.shape
    wih, whh, b, wfc, bfc = params
    H = whh.shape[0]
    O = wfc.shape[1]
    cdt = jnp.dtype(compute_dtype)
    cbytes = cdt.itemsize
    is_f32 = cdt == jnp.dtype(jnp.float32)

    vmem_limit, b_cap = _hw_config()
    if b_tile is None:
        b_tile = _pick_b_tile(B, b_cap, 16 if cbytes == 2 else 8)
    b_tile = min(b_tile, B)
    if t_chunk is None:
        t_chunk = _pick_t_chunk(T, b_tile, H, O, cbytes, vmem_limit)
    t_chunk = min(t_chunk, T)
    t_rem = T % t_chunk
    n_chunks = pl.cdiv(T, t_chunk)
    n_btiles = pl.cdiv(B, b_tile)

    # Hoisted input projection: one large, well-shaped matmul with the bias
    # folded in, emitted directly time-major (T, B, 4H).  f32 path keeps it at
    # HIGHEST precision; bf16 path stores the result as bf16.
    # TODO(synk): on v5e, fuse this projection into the kernel per T-chunk
    # (compute gx = x_chunk @ W_ih + b before the time loop) to avoid the
    # HBM write+read of the (T,B,4H) intermediate on the ~820 GB/s HBM.
    proj_precision = (lax.Precision.HIGHEST if is_f32 else lax.Precision.DEFAULT)
    gates_x = (jnp.einsum('bti,ig->tbg', x, wih, precision=proj_precision)
               + b).astype(cdt)
    whh_c = whh.astype(cdt)
    wfc_c = wfc.astype(cdt)
    bfc_f32 = bfc.astype(jnp.float32)

    unroll_main = _unroll_factor(t_chunk, b_tile, H)
    unroll_rem = _unroll_factor(t_rem, b_tile, H) if t_rem else 1

    kernel = functools.partial(
        lstm_predictor_kernel, hidden_size=H, t_chunk=t_chunk, t_rem=t_rem,
        unroll_main=unroll_main, unroll_rem=unroll_rem)

    cost = pl.CostEstimate(
        flops=2 * T * B * H * 4 * H + 2 * B * H * O,
        transcendentals=T * B * 5 * H,
        bytes_accessed=(T * B * 4 * H + H * 4 * H + H * O) * cbytes + B * O * 4,
    )

    # TODO(synk): for tiny batch tiles where the per-step matmul is
    # latency-bound, drive the MXU weight-stationary (pltpu.matmul_push_rhs /
    # matmul_acc_lhs / matmul_pop) pushing W_hh once per chunk.
    def build(single_buffer_weights):
        # W_hh / W_fc / bias have constant index maps: single-buffer them so
        # their VMEM goes to the gates_x chunk instead.
        wmode = ({"pipeline_mode": pl.Buffered(1)}
                 if single_buffer_weights else {})
        grid_spec = pltpu.PrefetchScalarGridSpec(
            num_scalar_prefetch=0,
            # Batch tiles are independent ("parallel": v7x's 2 TCs can shard
            # them); the time-chunk axis is the serial recurrence ("arbitrary").
            grid=(n_btiles, n_chunks),
            in_specs=[
                pl.BlockSpec((t_chunk, b_tile, 4 * H),
                             lambda bt, tc: (tc, bt, 0)),          # gates_x chunk
                pl.BlockSpec((H, 4 * H), lambda bt, tc: (0, 0), **wmode),  # W_hh^T
                pl.BlockSpec((H, O), lambda bt, tc: (0, 0), **wmode),      # fc W^T
                pl.BlockSpec((1, O), lambda bt, tc: (0, 0), **wmode),      # fc bias
            ],
            out_specs=pl.BlockSpec((b_tile, O), lambda bt, tc: (bt, 0)),
            scratch_shapes=[
                pltpu.VMEM((b_tile, H), jnp.float32),   # h state (always f32)
                pltpu.VMEM((b_tile, H), jnp.float32),   # c state (always f32)
            ],
        )
        return pl.pallas_call(
            kernel,
            out_shape=jax.ShapeDtypeStruct((B, O), jnp.float32),
            grid_spec=grid_spec,
            compiler_params=pltpu.CompilerParams(
                dimension_semantics=("parallel", "arbitrary"),
                vmem_limit_bytes=vmem_limit,
            ),
            cost_estimate=cost,
        )

    try:
        return build(True)(gates_x, whh_c, wfc_c, bfc_f32)
    except Exception:
        # TODO(synk): drop this fallback once pl.Buffered(1) single-buffering
        # of constant blocks is confirmed on all deployed jax versions.
        return build(False)(gates_x, whh_c, wfc_c, bfc_f32)


# ----------------------------------------------------------------------------
# Parameters / reference
# ----------------------------------------------------------------------------
def init_params(key, input_size, hidden_size, output_size):
    """Deterministic synthetic parameters matching nn.LSTM + nn.Linear shapes."""
    k = jax.random.split(key, 6)
    scale = 1.0 / jnp.sqrt(hidden_size)
    # PyTorch: weight_ih_l0 (4H, I), weight_hh_l0 (4H, H), biases (4H,)
    # stored here transposed for right-multiplication.
    wih = jax.random.uniform(k[0], (input_size, 4 * hidden_size),
                             jnp.float32, -scale, scale)
    whh = jax.random.uniform(k[1], (hidden_size, 4 * hidden_size),
                             jnp.float32, -scale, scale)
    b_ih = jax.random.uniform(k[2], (4 * hidden_size,), jnp.float32, -scale, scale)
    b_hh = jax.random.uniform(k[3], (4 * hidden_size,), jnp.float32, -scale, scale)
    b = (b_ih + b_hh).reshape(1, 4 * hidden_size)
    wfc = jax.random.uniform(k[4], (hidden_size, output_size),
                             jnp.float32, -scale, scale)
    bfc = jax.random.uniform(k[5], (1, output_size), jnp.float32, -scale, scale)
    return wih, whh, b, wfc, bfc


def lstm_predictor_ref(x, params):
    """Pure-JAX reference (mirrors PyTorch nn.LSTM + Linear forward), f32."""
    wih, whh, b, wfc, bfc = params
    B = x.shape[0]
    H = whh.shape[0]
    hp = lax.Precision.HIGHEST
    h = jnp.zeros((B, H), jnp.float32)
    c = jnp.zeros((B, H), jnp.float32)
    for t in range(x.shape[1]):
        gates = (jnp.dot(x[:, t, :], wih, precision=hp)
                 + jnp.dot(h, whh, precision=hp) + b)
        i_g = jax.nn.sigmoid(gates[:, 0 * H:1 * H])
        f_g = jax.nn.sigmoid(gates[:, 1 * H:2 * H])
        g_g = jnp.tanh(gates[:, 2 * H:3 * H])
        o_g = jax.nn.sigmoid(gates[:, 3 * H:4 * H])
        c = f_g * c + i_g * g_g
        h = o_g * jnp.tanh(c)
    return jnp.dot(h, wfc, precision=hp) + bfc


if __name__ == "__main__":
    batch, seq, input_size, hidden_size, output_size = 2, 8, 16, 32, 4

    key = jax.random.PRNGKey(0)
    kx, kp = jax.random.split(key)
    x = jax.random.normal(kx, (batch, seq, input_size), jnp.float32)
    params = init_params(kp, input_size, hidden_size, output_size)

    ref = lstm_predictor_ref(x, params)

    # f32 path (single chunk, fully unrolled time loop).
    out = jax.block_until_ready(
        lstm_predictor_forward(x, params, compute_dtype=jnp.float32))
    assert out.shape == (batch, output_size)
    assert jnp.allclose(out, ref, atol=2e-3, rtol=2e-3), (
        f"f32 max err {float(jnp.max(jnp.abs(out - ref)))}")

    # f32 path with a ragged T split (exercises the remainder-chunk branch).
    out_rg = jax.block_until_ready(
        lstm_predictor_forward(x, params, compute_dtype=jnp.float32, t_chunk=3))
    assert jnp.allclose(out_rg, ref, atol=2e-3, rtol=2e-3), (
        f"ragged max err {float(jnp.max(jnp.abs(out_rg - ref)))}")

    # bf16 compute path (f32 state + accumulation), looser tolerance.
    out_bf = jax.block_until_ready(
        lstm_predictor_forward(x, params, compute_dtype=jnp.bfloat16))
    assert jnp.allclose(out_bf, ref, atol=3e-2, rtol=3e-2), (
        f"bf16 max err {float(jnp.max(jnp.abs(out_bf - ref)))}")

    print("KERNEL_OK")
</pallas_src>

<mosaic_0001>
module attributes {stable_mosaic.version = 11 : i64} {
  func.func @lstm_predictor_kernel(%arg0: i32, %arg1: i32, %arg2: memref<8x2x128xf32, #tpu.memory_space<vmem>>, %arg3: memref<32x128xf32, #tpu.memory_space<vmem>>, %arg4: memref<32x4xf32, #tpu.memory_space<vmem>>, %arg5: memref<1x4xf32, #tpu.memory_space<vmem>>, %arg6: memref<2x4xf32, #tpu.memory_space<vmem>>, %arg7: memref<2x32xf32, #tpu.memory_space<vmem>>, %arg8: memref<2x32xf32, #tpu.memory_space<vmem>>) attributes {dimension_semantics = [#tpu.dimension_semantics<parallel>, #tpu.dimension_semantics<arbitrary>], iteration_bounds = array<i64: 1, 1>, scalar_prefetch = 0 : i64, scratch_operands = 2 : i64, tpu.core_type = #tpu.core_type<tc>, window_params = [{transform_indices = @transform_0, window_bounds = array<i64: 8, 2, 128>}, {pipeline_mode = #tpu.pipeline_mode<synchronous>, transform_indices = @transform_1, window_bounds = array<i64: 32, 128>}, {pipeline_mode = #tpu.pipeline_mode<synchronous>, transform_indices = @transform_2, window_bounds = array<i64: 32, 4>}, {pipeline_mode = #tpu.pipeline_mode<synchronous>, transform_indices = @transform_3, window_bounds = array<i64: 1, 4>}, {transform_indices = @transform_4, window_bounds = array<i64: 2, 4>}]} {
    %c0_i32 = arith.constant 0 : i32
    %0 = arith.cmpi eq, %arg1, %c0_i32 : i32
    %1 = arith.extui %0 : i1 to i32
    %c0_i32_0 = arith.constant 0 : i32
    %2 = arith.cmpi ne, %1, %c0_i32_0 : i32
    scf.if %2 {
      %cst_52 = arith.constant 0.000000e+00 : f32
      %219 = vector.broadcast %cst_52 : f32 to vector<2x32xf32>
      %c0_53 = arith.constant 0 : index
      %c0_54 = arith.constant 0 : index
      %220 = vector.load %arg7[%c0_53, %c0_54] : memref<2x32xf32, #tpu.memory_space<vmem>>, vector<2x32xf32>
      tpu.vector_store %arg7[%c0_53, %c0_54], %219 {strides = array<i32>} : memref<2x32xf32, #tpu.memory_space<vmem>>, vector<2x32xf32>,
      %cst_55 = arith.constant 0.000000e+00 : f32
      %221 = vector.broadcast %cst_55 : f32 to vector<2x32xf32>
      %c0_56 = arith.constant 0 : index
      %c0_57 = arith.constant 0 : index
      %222 = vector.load %arg8[%c0_56, %c0_57] : memref<2x32xf32, #tpu.memory_space<vmem>>, vector<2x32xf32>
      tpu.vector_store %arg8[%c0_56, %c0_57], %221 {strides = array<i32>} : memref<2x32xf32, #tpu.memory_space<vmem>>, vector<2x32xf32>,
    } else {
    }
    %c0 = arith.constant 0 : index
    %c0_1 = arith.constant 0 : index
    %3 = vector.load %arg3[%c0, %c0_1] : memref<32x128xf32, #tpu.memory_space<vmem>>, vector<32x128xf32>
    %c0_2 = arith.constant 0 : index
    %c0_3 = arith.constant 0 : index
    %4 = vector.load %arg7[%c0_2, %c0_3] : memref<2x32xf32, #tpu.memory_space<vmem>>, vector<2x32xf32>
    %c0_4 = arith.constant 0 : index
    %c0_5 = arith.constant 0 : index
    %5 = vector.load %arg8[%c0_4, %c0_5] : memref<2x32xf32, #tpu.memory_space<vmem>>, vector<2x32xf32>
    %c0_i32_6 = arith.constant 0 : i32
    %6 = arith.index_cast %c0_i32_6 : i32 to index
    %c0_7 = arith.constant 0 : index
    %c0_8 = arith.constant 0 : index
    %7 = vector.load %arg2[%6, %c0_7, %c0_8] : memref<8x2x128xf32, #tpu.memory_space<vmem>>, vector<1x2x128xf32>
    %8 = vector.shape_cast %7 : vector<1x2x128xf32> to vector<2x128xf32>
    %cst = arith.constant dense<0.000000e+00> : vector<2x128xf32>
    %9 = tpu.matmul %4, %3, %cst {dimension_numbers = #tpu.dot_dimension_numbers<[1], [0], [0], [1], [0, 0, 1, 1], [], []>} : vector<2x32xf32>, vector<32x128xf32>, vector<2x128xf32> -> vector<2x128xf32>
    %10 = arith.addf %8, %9 : vector<2x128xf32>
    %11 = vector.extract_strided_slice %10 {offsets = [0, 0], sizes = [2, 64], strides = [1, 1]} : vector<2x128xf32> to vector<2x64xf32>
    %12 = arith.negf %11 : vector<2x64xf32>
    %13 = math.exp %12 : vector<2x64xf32>
    %cst_9 = arith.constant 1.000000e+00 : f32
    %14 = vector.broadcast %cst_9 : f32 to vector<2x64xf32>
    %15 = arith.addf %14, %13 : vector<2x64xf32>
    %16 = arith.divf %14, %15 : vector<2x64xf32>
    %17 = vector.extract_strided_slice %16 {offsets = [0, 0], sizes = [2, 32], strides = [1, 1]} : vector<2x64xf32> to vector<2x32xf32>
    %18 = vector.extract_strided_slice %16 {offsets = [0, 32], sizes = [2, 32], strides = [1, 1]} : vector<2x64xf32> to vector<2x32xf32>
    %19 = vector.extract_strided_slice %10 {offsets = [0, 64], sizes = [2, 32], strides = [1, 1]} : vector<2x128xf32> to vector<2x32xf32>
    %20 = math.tanh %19 : vector<2x32xf32>
    %21 = vector.extract_strided_slice %10 {offsets = [0, 96], sizes = [2, 32], strides = [1, 1]} : vector<2x128xf32> to vector<2x32xf32>
    %22 = arith.negf %21 : vector<2x32xf32>
    %23 = math.exp %22 : vector<2x32xf32>
    %cst_10 = arith.constant 1.000000e+00 : f32
    %24 = vector.broadcast %cst_10 : f32 to vector<2x32xf32>
    %25 = arith.addf %24, %23 : vector<2x32xf32>
    %26 = arith.divf %24, %25 : vector<2x32xf32>
    %27 = arith.mulf %18, %5 : vector<2x32xf32>
    %28 = arith.mulf %17, %20 : vector<2x32xf32>
    %29 = arith.addf %27, %28 : vector<2x32xf32>
    %30 = math.tanh %29 : vector<2x32xf32>
    %31 = arith.mulf %26, %30 : vector<2x32xf32>
    %c1_i32 = arith.constant 1 : i32
    %32 = arith.index_cast %c1_i32 : i32 to index
    %c0_11 = arith.constant 0 : index
    %c0_12 = arith.constant 0 : index
    %33 = vector.load %arg2[%32, %c0_11, %c0_12] : memref<8x2x128xf32, #tpu.memory_space<vmem>>, vector<1x2x128xf32>
    %34 = vector.shape_cast %33 : vector<1x2x128xf32> to vector<2x128xf32>
    %cst_13 = arith.constant dense<0.000000e+00> : vector<2x128xf32>
    %35 = tpu.matmul %31, %3, %cst_13 {dimension_numbers = #tpu.dot_dimension_numbers<[1], [0], [0], [1], [0, 0, 1, 1], [], []>} : vector<2x32xf32>, vector<32x128xf32>, vector<2x128xf32> -> vector<2x128xf32>
    %36 = arith.addf %34, %35 : vector<2x128xf32>
    %37 = vector.extract_strided_slice %36 {offsets = [0, 0], sizes = [2, 64], strides = [1, 1]} : vector<2x128xf32> to vector<2x64xf32>
    %38 = arith.negf %37 : vector<2x64xf32>
    %39 = math.exp %38 : vector<2x64xf32>
    %cst_14 = arith.constant 1.000000e+00 : f32
    %40 = vector.broadcast %cst_14 : f32 to vector<2x64xf32>
    %41 = arith.addf %40, %39 : vector<2x64xf32>
    %42 = arith.divf %40, %41 : vector<2x64xf32>
    %43 = vector.extract_strided_slice %42 {offsets = [0, 0], sizes = [2, 32], strides = [1, 1]} : vector<2x64xf32> to vector<2x32xf32>
    %44 = vector.extract_strided_slice %42 {offsets = [0, 32], sizes = [2, 32], strides = [1, 1]} : vector<2x64xf32> to vector<2x32xf32>
    %45 = vector.extract_strided_slice %36 {offsets = [0, 64], sizes = [2, 32], strides = [1, 1]} : vector<2x128xf32> to vector<2x32xf32>
    %46 = math.tanh %45 : vector<2x32xf32>
    %47 = vector.extract_strided_slice %36 {offsets = [0, 96], sizes = [2, 32], strides = [1, 1]} : vector<2x128xf32> to vector<2x32xf32>
    %48 = arith.negf %47 : vector<2x32xf32>
    %49 = math.exp %48 : vector<2x32xf32>
    %cst_15 = arith.constant 1.000000e+00 : f32
    %50 = vector.broadcast %cst_15 : f32 to vector<2x32xf32>
    %51 = arith.addf %50, %49 : vector<2x32xf32>
    %52 = arith.divf %50, %51 : vector<2x32xf32>
    %53 = arith.mulf %44, %29 : vector<2x32xf32>
    %54 = arith.mulf %43, %46 : vector<2x32xf32>
    %55 = arith.addf %53, %54 : vector<2x32xf32>
    %56 = math.tanh %55 : vector<2x32xf32>
    %57 = arith.mulf %52, %56 : vector<2x32xf32>
    %c2_i32 = arith.constant 2 : i32
    %58 = arith.index_cast %c2_i32 : i32 to index
    %c0_16 = arith.constant 0 : index
    %c0_17 = arith.constant 0 : index
    %59 = vector.load %arg2[%58, %c0_16, %c0_17] : memref<8x2x128xf32, #tpu.memory_space<vmem>>, vector<1x2x128xf32>
    %60 = vector.shape_cast %59 : vector<1x2x128xf32> to vector<2x128xf32>
    %cst_18 = arith.constant dense<0.000000e+00> : vector<2x128xf32>
    %61 = tpu.matmul %57, %3, %cst_18 {dimension_numbers = #tpu.dot_dimension_numbers<[1], [0], [0], [1], [0, 0, 1, 1], [], []>} : vector<2x32xf32>, vector<32x128xf32>, vector<2x128xf32> -> vector<2x128xf32>
    %62 = arith.addf %60, %61 : vector<2x128xf32>
    %63 = vector.extract_strided_slice %62 {offsets = [0, 0], sizes = [2, 64], strides = [1, 1]} : vector<2x128xf32> to vector<2x64xf32>
    %64 = arith.negf %63 : vector<2x64xf32>
    %65 = math.exp %64 : vector<2x64xf32>
    %cst_19 = arith.constant 1.000000e+00 : f32
    %66 = vector.broadcast %cst_19 : f32 to vector<2x64xf32>
    %67 = arith.addf %66, %65 : vector<2x64xf32>
    %68 = arith.divf %66, %67 : vector<2x64xf32>
    %69 = vector.extract_strided_slice %68 {offsets = [0, 0], sizes = [2, 32], strides = [1, 1]} : vector<2x64xf32> to vector<2x32xf32>
    %70 = vector.extract_strided_slice %68 {offsets = [0, 32], sizes = [2, 32], strides = [1, 1]} : vector<2x64xf32> to vector<2x32xf32>
    %71 = vector.extract_strided_slice %62 {offsets = [0, 64], sizes = [2, 32], strides = [1, 1]} : vector<2x128xf32> to vector<2x32xf32>
    %72 = math.tanh %71 : vector<2x32xf32>
    %73 = vector.extract_strided_slice %62 {offsets = [0, 96], sizes = [2, 32], strides = [1, 1]} : vector<2x128xf32> to vector<2x32xf32>
    %74 = arith.negf %73 : vector<2x32xf32>
    %75 = math.exp %74 : vector<2x32xf32>
    %cst_20 = arith.constant 1.000000e+00 : f32
    %76 = vector.broadcast %cst_20 : f32 to vector<2x32xf32>
    %77 = arith.addf %76, %75 : vector<2x32xf32>
    %78 = arith.divf %76, %77 : vector<2x32xf32>
    %79 = arith.mulf %70, %55 : vector<2x32xf32>
    %80 = arith.mulf %69, %72 : vector<2x32xf32>
    %81 = arith.addf %79, %80 : vector<2x32xf32>
    %82 = math.tanh %81 : vector<2x32xf32>
    %83 = arith.mulf %78, %82 : vector<2x32xf32>
    %c3_i32 = arith.constant 3 : i32
    %84 = arith.index_cast %c3_i32 : i32 to index
    %c0_21 = arith.constant 0 : index
    %c0_22 = arith.constant 0 : index
    %85 = vector.load %arg2[%84, %c0_21, %c0_22] : memref<8x2x128xf32, #tpu.memory_space<vmem>>, vector<1x2x128xf32>
    %86 = vector.shape_cast %85 : vector<1x2x128xf32> to vector<2x128xf32>
    %cst_23 = arith.constant dense<0.000000e+00> : vector<2x128xf32>
    %87 = tpu.matmul %83, %3, %cst_23 {dimension_numbers = #tpu.dot_dimension_numbers<[1], [0], [0], [1], [0, 0, 1, 1], [], []>} : vector<2x32xf32>, vector<32x128xf32>, vector<2x128xf32> -> vector<2x128xf32>
    %88 = arith.addf %86, %87 : vector<2x128xf32>
    %89 = vector.extract_strided_slice %88 {offsets = [0, 0], sizes = [2, 64], strides = [1, 1]} : vector<2x128xf32> to vector<2x64xf32>
    %90 = arith.negf %89 : vector<2x64xf32>
    %91 = math.exp %90 : vector<2x64xf32>
    %cst_24 = arith.constant 1.000000e+00 : f32
    %92 = vector.broadcast %cst_24 : f32 to vector<2x64xf32>
    %93 = arith.addf %92, %91 : vector<2x64xf32>
    %94 = arith.divf %92, %93 : vector<2x64xf32>
    %95 = vector.extract_strided_slice %94 {offsets = [0, 0], sizes = [2, 32], strides = [1, 1]} : vector<2x64xf32> to vector<2x32xf32>
    %96 = vector.extract_strided_slice %94 {offsets = [0, 32], sizes = [2, 32], strides = [1, 1]} : vector<2x64xf32> to vector<2x32xf32>
    %97 = vector.extract_strided_slice %88 {offsets = [0, 64], sizes = [2, 32], strides = [1, 1]} : vector<2x128xf32> to vector<2x32xf32>
    %98 = math.tanh %97 : vector<2x32xf32>
    %99 = vector.extract_strided_slice %88 {offsets = [0, 96], sizes = [2, 32], strides = [1, 1]} : vector<2x128xf32> to vector<2x32xf32>
    %100 = arith.negf %99 : vector<2x32xf32>
    %101 = math.exp %100 : vector<2x32xf32>
    %cst_25 = arith.constant 1.000000e+00 : f32
    %102 = vector.broadcast %cst_25 : f32 to vector<2x32xf32>
    %103 = arith.addf %102, %101 : vector<2x32xf32>
    %104 = arith.divf %102, %103 : vector<2x32xf32>
    %105 = arith.mulf %96, %81 : vector<2x32xf32>
    %106 = arith.mulf %95, %98 : vector<2x32xf32>
    %107 = arith.addf %105, %106 : vector<2x32xf32>
    %108 = math.tanh %107 : vector<2x32xf32>
    %109 = arith.mulf %104, %108 : vector<2x32xf32>
    %c4_i32 = arith.constant 4 : i32
    %110 = arith.index_cast %c4_i32 : i32 to index
    %c0_26 = arith.constant 0 : index
    %c0_27 = arith.constant 0 : index
    %111 = vector.load %arg2[%110, %c0_26, %c0_27] : memref<8x2x128xf32, #tpu.memory_space<vmem>>, vector<1x2x128xf32>
    %112 = vector.shape_cast %111 : vector<1x2x128xf32> to vector<2x128xf32>
    %cst_28 = arith.constant dense<0.000000e+00> : vector<2x128xf32>
    %113 = tpu.matmul %109, %3, %cst_28 {dimension_numbers = #tpu.dot_dimension_numbers<[1], [0], [0], [1], [0, 0, 1, 1], [], []>} : vector<2x32xf32>, vector<32x128xf32>, vector<2x128xf32> -> vector<2x128xf32>
    %114 = arith.addf %112, %113 : vector<2x128xf32>
    %115 = vector.extract_strided_slice %114 {offsets = [0, 0], sizes = [2, 64], strides = [1, 1]} : vector<2x128xf32> to vector<2x64xf32>
    %116 = arith.negf %115 : vector<2x64xf32>
    %117 = math.exp %116 : vector<2x64xf32>
    %cst_29 = arith.constant 1.000000e+00 : f32
    %118 = vector.broadcast %cst_29 : f32 to vector<2x64xf32>
    %119 = arith.addf %118, %117 : vector<2x64xf32>
    %120 = arith.divf %118, %119 : vector<2x64xf32>
    %121 = vector.extract_strided_slice %120 {offsets = [0, 0], sizes = [2, 32], strides = [1, 1]} : vector<2x64xf32> to vector<2x32xf32>
    %122 = vector.extract_strided_slice %120 {offsets = [0, 32], sizes = [2, 32], strides = [1, 1]} : vector<2x64xf32> to vector<2x32xf32>
    %123 = vector.extract_strided_slice %114 {offsets = [0, 64], sizes = [2, 32], strides = [1, 1]} : vector<2x128xf32> to vector<2x32xf32>
    %124 = math.tanh %123 : vector<2x32xf32>
    %125 = vector.extract_strided_slice %114 {offsets = [0, 96], sizes = [2, 32], strides = [1, 1]} : vector<2x128xf32> to vector<2x32xf32>
    %126 = arith.negf %125 : vector<2x32xf32>
    %127 = math.exp %126 : vector<2x32xf32>
    %cst_30 = arith.constant 1.000000e+00 : f32
    %128 = vector.broadcast %cst_30 : f32 to vector<2x32xf32>
    %129 = arith.addf %128, %127 : vector<2x32xf32>
    %130 = arith.divf %128, %129 : vector<2x32xf32>
    %131 = arith.mulf %122, %107 : vector<2x32xf32>
    %132 = arith.mulf %121, %124 : vector<2x32xf32>
    %133 = arith.addf %131, %132 : vector<2x32xf32>
    %134 = math.tanh %133 : vector<2x32xf32>
    %135 = arith.mulf %130, %134 : vector<2x32xf32>
    %c5_i32 = arith.constant 5 : i32
    %136 = arith.index_cast %c5_i32 : i32 to index
    %c0_31 = arith.constant 0 : index
    %c0_32 = arith.constant 0 : index
    %137 = vector.load %arg2[%136, %c0_31, %c0_32] : memref<8x2x128xf32, #tpu.memory_space<vmem>>, vector<1x2x128xf32>
    %138 = vector.shape_cast %137 : vector<1x2x128xf32> to vector<2x128xf32>
    %cst_33 = arith.constant dense<0.000000e+00> : vector<2x128xf32>
    %139 = tpu.matmul %135, %3, %cst_33 {dimension_numbers = #tpu.dot_dimension_numbers<[1], [0], [0], [1], [0, 0, 1, 1], [], []>} : vector<2x32xf32>, vector<32x128xf32>, vector<2x128xf32> -> vector<2x128xf32>
    %140 = arith.addf %138, %139 : vector<2x128xf32>
    %141 = vector.extract_strided_slice %140 {offsets = [0, 0], sizes = [2, 64], strides = [1, 1]} : vector<2x128xf32> to vector<2x64xf32>
    %142 = arith.negf %141 : vector<2x64xf32>
    %143 = math.exp %142 : vector<2x64xf32>
    %cst_34 = arith.constant 1.000000e+00 : f32
    %144 = vector.broadcast %cst_34 : f32 to vector<2x64xf32>
    %145 = arith.addf %144, %143 : vector<2x64xf32>
    %146 = arith.divf %144, %145 : vector<2x64xf32>
    %147 = vector.extract_strided_slice %146 {offsets = [0, 0], sizes = [2, 32], strides = [1, 1]} : vector<2x64xf32> to vector<2x32xf32>
    %148 = vector.extract_strided_slice %146 {offsets = [0, 32], sizes = [2, 32], strides = [1, 1]} : vector<2x64xf32> to vector<2x32xf32>
    %149 = vector.extract_strided_slice %140 {offsets = [0, 64], sizes = [2, 32], strides = [1, 1]} : vector<2x128xf32> to vector<2x32xf32>
    %150 = math.tanh %149 : vector<2x32xf32>
    %151 = vector.extract_strided_slice %140 {offsets = [0, 96], sizes = [2, 32], strides = [1, 1]} : vector<2x128xf32> to vector<2x32xf32>
    %152 = arith.negf %151 : vector<2x32xf32>
    %153 = math.exp %152 : vector<2x32xf32>
    %cst_35 = arith.constant 1.000000e+00 : f32
    %154 = vector.broadcast %cst_35 : f32 to vector<2x32xf32>
    %155 = arith.addf %154, %153 : vector<2x32xf32>
    %156 = arith.divf %154, %155 : vector<2x32xf32>
    %157 = arith.mulf %148, %133 : vector<2x32xf32>
    %158 = arith.mulf %147, %150 : vector<2x32xf32>
    %159 = arith.addf %157, %158 : vector<2x32xf32>
    %160 = math.tanh %159 : vector<2x32xf32>
    %161 = arith.mulf %156, %160 : vector<2x32xf32>
    %c6_i32 = arith.constant 6 : i32
    %162 = arith.index_cast %c6_i32 : i32 to index
    %c0_36 = arith.constant 0 : index
    %c0_37 = arith.constant 0 : index
    %163 = vector.load %arg2[%162, %c0_36, %c0_37] : memref<8x2x128xf32, #tpu.memory_space<vmem>>, vector<1x2x128xf32>
    %164 = vector.shape_cast %163 : vector<1x2x128xf32> to vector<2x128xf32>
    %cst_38 = arith.constant dense<0.000000e+00> : vector<2x128xf32>
    %165 = tpu.matmul %161, %3, %cst_38 {dimension_numbers = #tpu.dot_dimension_numbers<[1], [0], [0], [1], [0, 0, 1, 1], [], []>} : vector<2x32xf32>, vector<32x128xf32>, vector<2x128xf32> -> vector<2x128xf32>
    %166 = arith.addf %164, %165 : vector<2x128xf32>
    %167 = vector.extract_strided_slice %166 {offsets = [0, 0], sizes = [2, 64], strides = [1, 1]} : vector<2x128xf32> to vector<2x64xf32>
    %168 = arith.negf %167 : vector<2x64xf32>
    %169 = math.exp %168 : vector<2x64xf32>
    %cst_39 = arith.constant 1.000000e+00 : f32
    %170 = vector.broadcast %cst_39 : f32 to vector<2x64xf32>
    %171 = arith.addf %170, %169 : vector<2x64xf32>
    %172 = arith.divf %170, %171 : vector<2x64xf32>
    %173 = vector.extract_strided_slice %172 {offsets = [0, 0], sizes = [2, 32], strides = [1, 1]} : vector<2x64xf32> to vector<2x32xf32>
    %174 = vector.extract_strided_slice %172 {offsets = [0, 32], sizes = [2, 32], strides = [1, 1]} : vector<2x64xf32> to vector<2x32xf32>
    %175 = vector.extract_strided_slice %166 {offsets = [0, 64], sizes = [2, 32], strides = [1, 1]} : vector<2x128xf32> to vector<2x32xf32>
    %176 = math.tanh %175 : vector<2x32xf32>
    %177 = vector.extract_strided_slice %166 {offsets = [0, 96], sizes = [2, 32], strides = [1, 1]} : vector<2x128xf32> to vector<2x32xf32>
    %178 = arith.negf %177 : vector<2x32xf32>
    %179 = math.exp %178 : vector<2x32xf32>
    %cst_40 = arith.constant 1.000000e+00 : f32
    %180 = vector.broadcast %cst_40 : f32 to vector<2x32xf32>
    %181 = arith.addf %180, %179 : vector<2x32xf32>
    %182 = arith.divf %180, %181 : vector<2x32xf32>
    %183 = arith.mulf %174, %159 : vector<2x32xf32>
    %184 = arith.mulf %173, %176 : vector<2x32xf32>
    %185 = arith.addf %183, %184 : vector<2x32xf32>
    %186 = math.tanh %185 : vector<2x32xf32>
    %187 = arith.mulf %182, %186 : vector<2x32xf32>
    %c7_i32 = arith.constant 7 : i32
    %188 = arith.index_cast %c7_i32 : i32 to index
    %c0_41 = arith.constant 0 : index
    %c0_42 = arith.constant 0 : index
    %189 = vector.load %arg2[%188, %c0_41, %c0_42] : memref<8x2x128xf32, #tpu.memory_space<vmem>>, vector<1x2x128xf32>
    %190 = vector.shape_cast %189 : vector<1x2x128xf32> to vector<2x128xf32>
    %cst_43 = arith.constant dense<0.000000e+00> : vector<2x128xf32>
    %191 = tpu.matmul %187, %3, %cst_43 {dimension_numbers = #tpu.dot_dimension_numbers<[1], [0], [0], [1], [0, 0, 1, 1], [], []>} : vector<2x32xf32>, vector<32x128xf32>, vector<2x128xf32> -> vector<2x128xf32>
    %192 = arith.addf %190, %191 : vector<2x128xf32>
    %193 = vector.extract_strided_slice %192 {offsets = [0, 0], sizes = [2, 64], strides = [1, 1]} : vector<2x128xf32> to vector<2x64xf32>
    %194 = arith.negf %193 : vector<2x64xf32>
    %195 = math.exp %194 : vector<2x64xf32>
    %cst_44 = arith.constant 1.000000e+00 : f32
    %196 = vector.broadcast %cst_44 : f32 to vector<2x64xf32>
    %197 = arith.addf %196, %195 : vector<2x64xf32>
    %198 = arith.divf %196, %197 : vector<2x64xf32>
    %199 = vector.extract_strided_slice %198 {offsets = [0, 0], sizes = [2, 32], strides = [1, 1]} : vector<2x64xf32> to vector<2x32xf32>
    %200 = vector.extract_strided_slice %198 {offsets = [0, 32], sizes = [2, 32], strides = [1, 1]} : vector<2x64xf32> to vector<2x32xf32>
    %201 = vector.extract_strided_slice %192 {offsets = [0, 64], sizes = [2, 32], strides = [1, 1]} : vector<2x128xf32> to vector<2x32xf32>
    %202 = math.tanh %201 : vector<2x32xf32>
    %203 = vector.extract_strided_slice %192 {offsets = [0, 96], sizes = [2, 32], strides = [1, 1]} : vector<2x128xf32> to vector<2x32xf32>
    %204 = arith.negf %203 : vector<2x32xf32>
    %205 = math.exp %204 : vector<2x32xf32>
    %cst_45 = arith.constant 1.000000e+00 : f32
    %206 = vector.broadcast %cst_45 : f32 to vector<2x32xf32>
    %207 = arith.addf %206, %205 : vector<2x32xf32>
    %208 = arith.divf %206, %207 : vector<2x32xf32>
    %209 = arith.mulf %200, %185 : vector<2x32xf32>
    %210 = arith.mulf %199, %202 : vector<2x32xf32>
    %211 = arith.addf %209, %210 : vector<2x32xf32>
    %212 = math.tanh %211 : vector<2x32xf32>
    %213 = arith.mulf %208, %212 : vector<2x32xf32>
    %c8_i32 = arith.constant 8 : i32
    %c0_46 = arith.constant 0 : index
    %c0_47 = arith.constant 0 : index
    %214 = vector.load %arg7[%c0_46, %c0_47] : memref<2x32xf32, #tpu.memory_space<vmem>>, vector<2x32xf32>
    tpu.vector_store %arg7[%c0_46, %c0_47], %213 {strides = array<i32>} : memref<2x32xf32, #tpu.memory_space<vmem>>, vector<2x32xf32>,
    %c0_48 = arith.constant 0 : index
    %c0_49 = arith.constant 0 : index
    %215 = vector.load %arg8[%c0_48, %c0_49] : memref<2x32xf32, #tpu.memory_space<vmem>>, vector<2x32xf32>
    tpu.vector_store %arg8[%c0_48, %c0_49], %211 {strides = array<i32>} : memref<2x32xf32, #tpu.memory_space<vmem>>, vector<2x32xf32>,
    %c0_i32_50 = arith.constant 0 : i32
    %216 = arith.cmpi eq, %arg1, %c0_i32_50 : i32
    %217 = arith.extui %216 : i1 to i32
    %c0_i32_51 = arith.constant 0 : i32
    %218 = arith.cmpi ne, %217, %c0_i32_51 : i32
    scf.if %218 {
      %c0_52 = arith.constant 0 : index
      %c0_53 = arith.constant 0 : index
      %219 = vector.load %arg7[%c0_52, %c0_53] : memref<2x32xf32, #tpu.memory_space<vmem>>, vector<2x32xf32>
      %c0_54 = arith.constant 0 : index
      %c0_55 = arith.constant 0 : index
      %220 = vector.load %arg4[%c0_54, %c0_55] : memref<32x4xf32, #tpu.memory_space<vmem>>, vector<32x4xf32>
      %cst_56 = arith.constant dense<0.000000e+00> : vector<2x4xf32>
      %221 = tpu.matmul %219, %220, %cst_56 {dimension_numbers = #tpu.dot_dimension_numbers<[1], [0], [0], [1], [0, 0, 1, 1], [], []>} : vector<2x32xf32>, vector<32x4xf32>, vector<2x4xf32> -> vector<2x4xf32>
      %c0_57 = arith.constant 0 : index
      %c0_58 = arith.constant 0 : index
      %222 = vector.load %arg5[%c0_57, %c0_58] : memref<1x4xf32, #tpu.memory_space<vmem>>, vector<1x4xf32>
      %223 = vector.broadcast %222 : vector<1x4xf32> to vector<2x4xf32>
      %224 = arith.addf %221, %223 : vector<2x4xf32>
      %c0_59 = arith.constant 0 : index
      %c0_60 = arith.constant 0 : index
      %225 = vector.load %arg6[%c0_59, %c0_60] : memref<2x4xf32, #tpu.memory_space<vmem>>, vector<2x4xf32>
      tpu.vector_store %arg6[%c0_59, %c0_60], %224 {strides = array<i32>} : memref<2x4xf32, #tpu.memory_space<vmem>>, vector<2x4xf32>,
    } else {
    }
    return
  }
  func.func @transform_0(%arg0: i32, %arg1: i32) -> (i32, i32, i32) {
    %c0_i32 = arith.constant 0 : i32
    %c0_i32_0 = arith.constant 0 : i32
    return %arg1, %arg0, %c0_i32 : i32, i32, i32
  }
  func.func @transform_1(%arg0: i32, %arg1: i32) -> (i32, i32) {
    %c0_i32 = arith.constant 0 : i32
    %c0_i32_0 = arith.constant 0 : i32
    %c0_i32_1 = arith.constant 0 : i32
    return %c0_i32, %c0_i32_0 : i32, i32
  }
  func.func @transform_2(%arg0: i32, %arg1: i32) -> (i32, i32) {
    %c0_i32 = arith.constant 0 : i32
    %c0_i32_0 = arith.constant 0 : i32
    %c0_i32_1 = arith.constant 0 : i32
    return %c0_i32, %c0_i32_0 : i32, i32
  }
  func.func @transform_3(%arg0: i32, %arg1: i32) -> (i32, i32) {
    %c0_i32 = arith.constant 0 : i32
    %c0_i32_0 = arith.constant 0 : i32
    %c0_i32_1 = arith.constant 0 : i32
    return %c0_i32, %c0_i32_0 : i32, i32
  }
  func.func @transform_4(%arg0: i32, %arg1: i32) -> (i32, i32) {
    %c0_i32 = arith.constant 0 : i32
    %c0_i32_0 = arith.constant 0 : i32
    return %arg0, %c0_i32 : i32, i32
  }
}

module attributes {stable_mosaic.version = 11 : i64} {
  func.func @lstm_predictor_kernel(%arg0: i32, %arg1: i32, %arg2: memref<8x2x128xf32, #tpu.memory_space<vmem>>, %arg3: memref<32x128xf32, #tpu.memory_space<vmem>>, %arg4: memref<32x4xf32, #tpu.memory_space<vmem>>, %arg5: memref<1x4xf32, #tpu.memory_space<vmem>>, %arg6: memref<2x4xf32, #tpu.memory_space<vmem>>, %arg7: memref<2x32xf32, #tpu.memory_space<vmem>>, %arg8: memref<2x32xf32, #tpu.memory_space<vmem>>) attributes {dimension_semantics = [#tpu.dimension_semantics<parallel>, #tpu.dimension_semantics<arbitrary>], iteration_bounds = array<i64: 1, 1>, scalar_prefetch = 0 : i64, scratch_operands = 2 : i64, tpu.core_type = #tpu.core_type<tc>, window_params = [{transform_indices = @transform_0, window_bounds = array<i64: 8, 2, 128>}, {pipeline_mode = #tpu.pipeline_mode<synchronous>, transform_indices = @transform_1, window_bounds = array<i64: 32, 128>}, {pipeline_mode = #tpu.pipeline_mode<synchronous>, transform_indices = @transform_2, window_bounds = array<i64: 32, 4>}, {pipeline_mode = #tpu.pipeline_mode<synchronous>, transform_indices = @transform_3, window_bounds = array<i64: 1, 4>}, {transform_indices = @transform_4, window_bounds = array<i64: 2, 4>}]} {
    %c0_i32 = arith.constant 0 : i32
    %0 = arith.cmpi eq, %arg1, %c0_i32 : i32
    %1 = arith.extui %0 : i1 to i32
    %c0_i32_0 = arith.constant 0 : i32
    %2 = arith.cmpi ne, %1, %c0_i32_0 : i32
    scf.if %2 {
      %cst_52 = arith.constant 0.000000e+00 : f32
      %219 = vector.broadcast %cst_52 : f32 to vector<2x32xf32>
      %c0_53 = arith.constant 0 : index
      %c0_54 = arith.constant 0 : index
      %220 = vector.load %arg7[%c0_53, %c0_54] : memref<2x32xf32, #tpu.memory_space<vmem>>, vector<2x32xf32>
      tpu.vector_store %arg7[%c0_53, %c0_54], %219 {strides = array<i32>} : memref<2x32xf32, #tpu.memory_space<vmem>>, vector<2x32xf32>,
      %cst_55 = arith.constant 0.000000e+00 : f32
      %221 = vector.broadcast %cst_55 : f32 to vector<2x32xf32>
      %c0_56 = arith.constant 0 : index
      %c0_57 = arith.constant 0 : index
      %222 = vector.load %arg8[%c0_56, %c0_57] : memref<2x32xf32, #tpu.memory_space<vmem>>, vector<2x32xf32>
      tpu.vector_store %arg8[%c0_56, %c0_57], %221 {strides = array<i32>} : memref<2x32xf32, #tpu.memory_space<vmem>>, vector<2x32xf32>,
    } else {
    }
    %c0 = arith.constant 0 : index
    %c0_1 = arith.constant 0 : index
    %3 = vector.load %arg3[%c0, %c0_1] : memref<32x128xf32, #tpu.memory_space<vmem>>, vector<32x128xf32>
    %c0_2 = arith.constant 0 : index
    %c0_3 = arith.constant 0 : index
    %4 = vector.load %arg7[%c0_2, %c0_3] : memref<2x32xf32, #tpu.memory_space<vmem>>, vector<2x32xf32>
    %c0_4 = arith.constant 0 : index
    %c0_5 = arith.constant 0 : index
    %5 = vector.load %arg8[%c0_4, %c0_5] : memref<2x32xf32, #tpu.memory_space<vmem>>, vector<2x32xf32>
    %c0_i32_6 = arith.constant 0 : i32
    %6 = arith.index_cast %c0_i32_6 : i32 to index
    %c0_7 = arith.constant 0 : index
    %c0_8 = arith.constant 0 : index
    %7 = vector.load %arg2[%6, %c0_7, %c0_8] : memref<8x2x128xf32, #tpu.memory_space<vmem>>, vector<1x2x128xf32>
    %8 = vector.shape_cast %7 : vector<1x2x128xf32> to vector<2x128xf32>
    %cst = arith.constant dense<0.000000e+00> : vector<2x128xf32>
    %9 = tpu.matmul %4, %3, %cst {dimension_numbers = #tpu.dot_dimension_numbers<[1], [0], [0], [1], [0, 0, 1, 1], [], []>} : vector<2x32xf32>, vector<32x128xf32>, vector<2x128xf32> -> vector<2x128xf32>
    %10 = arith.addf %8, %9 : vector<2x128xf32>
    %11 = vector.extract_strided_slice %10 {offsets = [0, 0], sizes = [2, 64], strides = [1, 1]} : vector<2x128xf32> to vector<2x64xf32>
    %12 = arith.negf %11 : vector<2x64xf32>
    %13 = math.exp %12 : vector<2x64xf32>
    %cst_9 = arith.constant 1.000000e+00 : f32
    %14 = vector.broadcast %cst_9 : f32 to vector<2x64xf32>
    %15 = arith.addf %14, %13 : vector<2x64xf32>
    %16 = arith.divf %14, %15 : vector<2x64xf32>
    %17 = vector.extract_strided_slice %16 {offsets = [0, 0], sizes = [2, 32], strides = [1, 1]} : vector<2x64xf32> to vector<2x32xf32>
    %18 = vector.extract_strided_slice %16 {offsets = [0, 32], sizes = [2, 32], strides = [1, 1]} : vector<2x64xf32> to vector<2x32xf32>
    %19 = vector.extract_strided_slice %10 {offsets = [0, 64], sizes = [2, 32], strides = [1, 1]} : vector<2x128xf32> to vector<2x32xf32>
    %20 = math.tanh %19 : vector<2x32xf32>
    %21 = vector.extract_strided_slice %10 {offsets = [0, 96], sizes = [2, 32], strides = [1, 1]} : vector<2x128xf32> to vector<2x32xf32>
    %22 = arith.negf %21 : vector<2x32xf32>
    %23 = math.exp %22 : vector<2x32xf32>
    %cst_10 = arith.constant 1.000000e+00 : f32
    %24 = vector.broadcast %cst_10 : f32 to vector<2x32xf32>
    %25 = arith.addf %24, %23 : vector<2x32xf32>
    %26 = arith.divf %24, %25 : vector<2x32xf32>
    %27 = arith.mulf %18, %5 : vector<2x32xf32>
    %28 = arith.mulf %17, %20 : vector<2x32xf32>
    %29 = arith.addf %27, %28 : vector<2x32xf32>
    %30 = math.tanh %29 : vector<2x32xf32>
    %31 = arith.mulf %26, %30 : vector<2x32xf32>
    %c1_i32 = arith.constant 1 : i32
    %32 = arith.index_cast %c1_i32 : i32 to index
    %c0_11 = arith.constant 0 : index
    %c0_12 = arith.constant 0 : index
    %33 = vector.load %arg2[%32, %c0_11, %c0_12] : memref<8x2x128xf32, #tpu.memory_space<vmem>>, vector<1x2x128xf32>
    %34 = vector.shape_cast %33 : vector<1x2x128xf32> to vector<2x128xf32>
    %cst_13 = arith.constant dense<0.000000e+00> : vector<2x128xf32>
    %35 = tpu.matmul %31, %3, %cst_13 {dimension_numbers = #tpu.dot_dimension_numbers<[1], [0], [0], [1], [0, 0, 1, 1], [], []>} : vector<2x32xf32>, vector<32x128xf32>, vector<2x128xf32> -> vector<2x128xf32>
    %36 = arith.addf %34, %35 : vector<2x128xf32>
    %37 = vector.extract_strided_slice %36 {offsets = [0, 0], sizes = [2, 64], strides = [1, 1]} : vector<2x128xf32> to vector<2x64xf32>
    %38 = arith.negf %37 : vector<2x64xf32>
    %39 = math.exp %38 : vector<2x64xf32>
    %cst_14 = arith.constant 1.000000e+00 : f32
    %40 = vector.broadcast %cst_14 : f32 to vector<2x64xf32>
    %41 = arith.addf %40, %39 : vector<2x64xf32>
    %42 = arith.divf %40, %41 : vector<2x64xf32>
    %43 = vector.extract_strided_slice %42 {offsets = [0, 0], sizes = [2, 32], strides = [1, 1]} : vector<2x64xf32> to vector<2x32xf32>
    %44 = vector.extract_strided_slice %42 {offsets = [0, 32], sizes = [2, 32], strides = [1, 1]} : vector<2x64xf32> to vector<2x32xf32>
    %45 = vector.extract_strided_slice %36 {offsets = [0, 64], sizes = [2, 32], strides = [1, 1]} : vector<2x128xf32> to vector<2x32xf32>
    %46 = math.tanh %45 : vector<2x32xf32>
    %47 = vector.extract_strided_slice %36 {offsets = [0, 96], sizes = [2, 32], strides = [1, 1]} : vector<2x128xf32> to vector<2x32xf32>
    %48 = arith.negf %47 : vector<2x32xf32>
    %49 = math.exp %48 : vector<2x32xf32>
    %cst_15 = arith.constant 1.000000e+00 : f32
    %50 = vector.broadcast %cst_15 : f32 to vector<2x32xf32>
    %51 = arith.addf %50, %49 : vector<2x32xf32>
    %52 = arith.divf %50, %51 : vector<2x32xf32>
    %53 = arith.mulf %44, %29 : vector<2x32xf32>
    %54 = arith.mulf %43, %46 : vector<2x32xf32>
    %55 = arith.addf %53, %54 : vector<2x32xf32>
    %56 = math.tanh %55 : vector<2x32xf32>
    %57 = arith.mulf %52, %56 : vector<2x32xf32>
    %c2_i32 = arith.constant 2 : i32
    %58 = arith.index_cast %c2_i32 : i32 to index
    %c0_16 = arith.constant 0 : index
    %c0_17 = arith.constant 0 : index
    %59 = vector.load %arg2[%58, %c0_16, %c0_17] : memref<8x2x128xf32, #tpu.memory_space<vmem>>, vector<1x2x128xf32>
    %60 = vector.shape_cast %59 : vector<1x2x128xf32> to vector<2x128xf32>
    %cst_18 = arith.constant dense<0.000000e+00> : vector<2x128xf32>
    %61 = tpu.matmul %57, %3, %cst_18 {dimension_numbers = #tpu.dot_dimension_numbers<[1], [0], [0], [1], [0, 0, 1, 1], [], []>} : vector<2x32xf32>, vector<32x128xf32>, vector<2x128xf32> -> vector<2x128xf32>
    %62 = arith.addf %60, %61 : vector<2x128xf32>
    %63 = vector.extract_strided_slice %62 {offsets = [0, 0], sizes = [2, 64], strides = [1, 1]} : vector<2x128xf32> to vector<2x64xf32>
    %64 = arith.negf %63 : vector<2x64xf32>
    %65 = math.exp %64 : vector<2x64xf32>
    %cst_19 = arith.constant 1.000000e+00 : f32
    %66 = vector.broadcast %cst_19 : f32 to vector<2x64xf32>
    %67 = arith.addf %66, %65 : vector<2x64xf32>
    %68 = arith.divf %66, %67 : vector<2x64xf32>
    %69 = vector.extract_strided_slice %68 {offsets = [0, 0], sizes = [2, 32], strides = [1, 1]} : vector<2x64xf32> to vector<2x32xf32>
    %70 = vector.extract_strided_slice %68 {offsets = [0, 32], sizes = [2, 32], strides = [1, 1]} : vector<2x64xf32> to vector<2x32xf32>
    %71 = vector.extract_strided_slice %62 {offsets = [0, 64], sizes = [2, 32], strides = [1, 1]} : vector<2x128xf32> to vector<2x32xf32>
    %72 = math.tanh %71 : vector<2x32xf32>
    %73 = vector.extract_strided_slice %62 {offsets = [0, 96], sizes = [2, 32], strides = [1, 1]} : vector<2x128xf32> to vector<2x32xf32>
    %74 = arith.negf %73 : vector<2x32xf32>
    %75 = math.exp %74 : vector<2x32xf32>
    %cst_20 = arith.constant 1.000000e+00 : f32
    %76 = vector.broadcast %cst_20 : f32 to vector<2x32xf32>
    %77 = arith.addf %76, %75 : vector<2x32xf32>
    %78 = arith.divf %76, %77 : vector<2x32xf32>
    %79 = arith.mulf %70, %55 : vector<2x32xf32>
    %80 = arith.mulf %69, %72 : vector<2x32xf32>
    %81 = arith.addf %79, %80 : vector<2x32xf32>
    %82 = math.tanh %81 : vector<2x32xf32>
    %83 = arith.mulf %78, %82 : vector<2x32xf32>
    %c3_i32 = arith.constant 3 : i32
    %84 = arith.index_cast %c3_i32 : i32 to index
    %c0_21 = arith.constant 0 : index
    %c0_22 = arith.constant 0 : index
    %85 = vector.load %arg2[%84, %c0_21, %c0_22] : memref<8x2x128xf32, #tpu.memory_space<vmem>>, vector<1x2x128xf32>
    %86 = vector.shape_cast %85 : vector<1x2x128xf32> to vector<2x128xf32>
    %cst_23 = arith.constant dense<0.000000e+00> : vector<2x128xf32>
    %87 = tpu.matmul %83, %3, %cst_23 {dimension_numbers = #tpu.dot_dimension_numbers<[1], [0], [0], [1], [0, 0, 1, 1], [], []>} : vector<2x32xf32>, vector<32x128xf32>, vector<2x128xf32> -> vector<2x128xf32>
    %88 = arith.addf %86, %87 : vector<2x128xf32>
    %89 = vector.extract_strided_slice %88 {offsets = [0, 0], sizes = [2, 64], strides = [1, 1]} : vector<2x128xf32> to vector<2x64xf32>
    %90 = arith.negf %89 : vector<2x64xf32>
    %91 = math.exp %90 : vector<2x64xf32>
    %cst_24 = arith.constant 1.000000e+00 : f32
    %92 = vector.broadcast %cst_24 : f32 to vector<2x64xf32>
    %93 = arith.addf %92, %91 : vector<2x64xf32>
    %94 = arith.divf %92, %93 : vector<2x64xf32>
    %95 = vector.extract_strided_slice %94 {offsets = [0, 0], sizes = [2, 32], strides = [1, 1]} : vector<2x64xf32> to vector<2x32xf32>
    %96 = vector.extract_strided_slice %94 {offsets = [0, 32], sizes = [2, 32], strides = [1, 1]} : vector<2x64xf32> to vector<2x32xf32>
    %97 = vector.extract_strided_slice %88 {offsets = [0, 64], sizes = [2, 32], strides = [1, 1]} : vector<2x128xf32> to vector<2x32xf32>
    %98 = math.tanh %97 : vector<2x32xf32>
    %99 = vector.extract_strided_slice %88 {offsets = [0, 96], sizes = [2, 32], strides = [1, 1]} : vector<2x128xf32> to vector<2x32xf32>
    %100 = arith.negf %99 : vector<2x32xf32>
    %101 = math.exp %100 : vector<2x32xf32>
    %cst_25 = arith.constant 1.000000e+00 : f32
    %102 = vector.broadcast %cst_25 : f32 to vector<2x32xf32>
    %103 = arith.addf %102, %101 : vector<2x32xf32>
    %104 = arith.divf %102, %103 : vector<2x32xf32>
    %105 = arith.mulf %96, %81 : vector<2x32xf32>
    %106 = arith.mulf %95, %98 : vector<2x32xf32>
    %107 = arith.addf %105, %106 : vector<2x32xf32>
    %108 = math.tanh %107 : vector<2x32xf32>
    %109 = arith.mulf %104, %108 : vector<2x32xf32>
    %c4_i32 = arith.constant 4 : i32
    %110 = arith.index_cast %c4_i32 : i32 to index
    %c0_26 = arith.constant 0 : index
    %c0_27 = arith.constant 0 : index
    %111 = vector.load %arg2[%110, %c0_26, %c0_27] : memref<8x2x128xf32, #tpu.memory_space<vmem>>, vector<1x2x128xf32>
    %112 = vector.shape_cast %111 : vector<1x2x128xf32> to vector<2x128xf32>
    %cst_28 = arith.constant dense<0.000000e+00> : vector<2x128xf32>
    %113 = tpu.matmul %109, %3, %cst_28 {dimension_numbers = #tpu.dot_dimension_numbers<[1], [0], [0], [1], [0, 0, 1, 1], [], []>} : vector<2x32xf32>, vector<32x128xf32>, vector<2x128xf32> -> vector<2x128xf32>
    %114 = arith.addf %112, %113 : vector<2x128xf32>
    %115 = vector.extract_strided_slice %114 {offsets = [0, 0], sizes = [2, 64], strides = [1, 1]} : vector<2x128xf32> to vector<2x64xf32>
    %116 = arith.negf %115 : vector<2x64xf32>
    %117 = math.exp %116 : vector<2x64xf32>
    %cst_29 = arith.constant 1.000000e+00 : f32
    %118 = vector.broadcast %cst_29 : f32 to vector<2x64xf32>
    %119 = arith.addf %118, %117 : vector<2x64xf32>
    %120 = arith.divf %118, %119 : vector<2x64xf32>
    %121 = vector.extract_strided_slice %120 {offsets = [0, 0], sizes = [2, 32], strides = [1, 1]} : vector<2x64xf32> to vector<2x32xf32>
    %122 = vector.extract_strided_slice %120 {offsets = [0, 32], sizes = [2, 32], strides = [1, 1]} : vector<2x64xf32> to vector<2x32xf32>
    %123 = vector.extract_strided_slice %114 {offsets = [0, 64], sizes = [2, 32], strides = [1, 1]} : vector<2x128xf32> to vector<2x32xf32>
    %124 = math.tanh %123 : vector<2x32xf32>
    %125 = vector.extract_strided_slice %114 {offsets = [0, 96], sizes = [2, 32], strides = [1, 1]} : vector<2x128xf32> to vector<2x32xf32>
    %126 = arith.negf %125 : vector<2x32xf32>
    %127 = math.exp %126 : vector<2x32xf32>
    %cst_30 = arith.constant 1.000000e+00 : f32
    %128 = vector.broadcast %cst_30 : f32 to vector<2x32xf32>
    %129 = arith.addf %128, %127 : vector<2x32xf32>
    %130 = arith.divf %128, %129 : vector<2x32xf32>
    %131 = arith.mulf %122, %107 : vector<2x32xf32>
    %132 = arith.mulf %121, %124 : vector<2x32xf32>
    %133 = arith.addf %131, %132 : vector<2x32xf32>
    %134 = math.tanh %133 : vector<2x32xf32>
    %135 = arith.mulf %130, %134 : vector<2x32xf32>
    %c5_i32 = arith.constant 5 : i32
    %136 = arith.index_cast %c5_i32 : i32 to index
    %c0_31 = arith.constant 0 : index
    %c0_32 = arith.constant 0 : index
    %137 = vector.load %arg2[%136, %c0_31, %c0_32] : memref<8x2x128xf32, #tpu.memory_space<vmem>>, vector<1x2x128xf32>
    %138 = vector.shape_cast %137 : vector<1x2x128xf32> to vector<2x128xf32>
    %cst_33 = arith.constant dense<0.000000e+00> : vector<2x128xf32>
    %139 = tpu.matmul %135, %3, %cst_33 {dimension_numbers = #tpu.dot_dimension_numbers<[1], [0], [0], [1], [0, 0, 1, 1], [], []>} : vector<2x32xf32>, vector<32x128xf32>, vector<2x128xf32> -> vector<2x128xf32>
    %140 = arith.addf %138, %139 : vector<2x128xf32>
    %141 = vector.extract_strided_slice %140 {offsets = [0, 0], sizes = [2, 64], strides = [1, 1]} : vector<2x128xf32> to vector<2x64xf32>
    %142 = arith.negf %141 : vector<2x64xf32>
    %143 = math.exp %142 : vector<2x64xf32>
    %cst_34 = arith.constant 1.000000e+00 : f32
    %144 = vector.broadcast %cst_34 : f32 to vector<2x64xf32>
    %145 = arith.addf %144, %143 : vector<2x64xf32>
    %146 = arith.divf %144, %145 : vector<2x64xf32>
    %147 = vector.extract_strided_slice %146 {offsets = [0, 0], sizes = [2, 32], strides = [1, 1]} : vector<2x64xf32> to vector<2x32xf32>
    %148 = vector.extract_strided_slice %146 {offsets = [0, 32], sizes = [2, 32], strides = [1, 1]} : vector<2x64xf32> to vector<2x32xf32>
    %149 = vector.extract_strided_slice %140 {offsets = [0, 64], sizes = [2, 32], strides = [1, 1]} : vector<2x128xf32> to vector<2x32xf32>
    %150 = math.tanh %149 : vector<2x32xf32>
    %151 = vector.extract_strided_slice %140 {offsets = [0, 96], sizes = [2, 32], strides = [1, 1]} : vector<2x128xf32> to vector<2x32xf32>
    %152 = arith.negf %151 : vector<2x32xf32>
    %153 = math.exp %152 : vector<2x32xf32>
    %cst_35 = arith.constant 1.000000e+00 : f32
    %154 = vector.broadcast %cst_35 : f32 to vector<2x32xf32>
    %155 = arith.addf %154, %153 : vector<2x32xf32>
    %156 = arith.divf %154, %155 : vector<2x32xf32>
    %157 = arith.mulf %148, %133 : vector<2x32xf32>
    %158 = arith.mulf %147, %150 : vector<2x32xf32>
    %159 = arith.addf %157, %158 : vector<2x32xf32>
    %160 = math.tanh %159 : vector<2x32xf32>
    %161 = arith.mulf %156, %160 : vector<2x32xf32>
    %c6_i32 = arith.constant 6 : i32
    %162 = arith.index_cast %c6_i32 : i32 to index
    %c0_36 = arith.constant 0 : index
    %c0_37 = arith.constant 0 : index
    %163 = vector.load %arg2[%162, %c0_36, %c0_37] : memref<8x2x128xf32, #tpu.memory_space<vmem>>, vector<1x2x128xf32>
    %164 = vector.shape_cast %163 : vector<1x2x128xf32> to vector<2x128xf32>
    %cst_38 = arith.constant dense<0.000000e+00> : vector<2x128xf32>
    %165 = tpu.matmul %161, %3, %cst_38 {dimension_numbers = #tpu.dot_dimension_numbers<[1], [0], [0], [1], [0, 0, 1, 1], [], []>} : vector<2x32xf32>, vector<32x128xf32>, vector<2x128xf32> -> vector<2x128xf32>
    %166 = arith.addf %164, %165 : vector<2x128xf32>
    %167 = vector.extract_strided_slice %166 {offsets = [0, 0], sizes = [2, 64], strides = [1, 1]} : vector<2x128xf32> to vector<2x64xf32>
    %168 = arith.negf %167 : vector<2x64xf32>
    %169 = math.exp %168 : vector<2x64xf32>
    %cst_39 = arith.constant 1.000000e+00 : f32
    %170 = vector.broadcast %cst_39 : f32 to vector<2x64xf32>
    %171 = arith.addf %170, %169 : vector<2x64xf32>
    %172 = arith.divf %170, %171 : vector<2x64xf32>
    %173 = vector.extract_strided_slice %172 {offsets = [0, 0], sizes = [2, 32], strides = [1, 1]} : vector<2x64xf32> to vector<2x32xf32>
    %174 = vector.extract_strided_slice %172 {offsets = [0, 32], sizes = [2, 32], strides = [1, 1]} : vector<2x64xf32> to vector<2x32xf32>
    %175 = vector.extract_strided_slice %166 {offsets = [0, 64], sizes = [2, 32], strides = [1, 1]} : vector<2x128xf32> to vector<2x32xf32>
    %176 = math.tanh %175 : vector<2x32xf32>
    %177 = vector.extract_strided_slice %166 {offsets = [0, 96], sizes = [2, 32], strides = [1, 1]} : vector<2x128xf32> to vector<2x32xf32>
    %178 = arith.negf %177 : vector<2x32xf32>
    %179 = math.exp %178 : vector<2x32xf32>
    %cst_40 = arith.constant 1.000000e+00 : f32
    %180 = vector.broadcast %cst_40 : f32 to vector<2x32xf32>
    %181 = arith.addf %180, %179 : vector<2x32xf32>
    %182 = arith.divf %180, %181 : vector<2x32xf32>
    %183 = arith.mulf %174, %159 : vector<2x32xf32>
    %184 = arith.mulf %173, %176 : vector<2x32xf32>
    %185 = arith.addf %183, %184 : vector<2x32xf32>
    %186 = math.tanh %185 : vector<2x32xf32>
    %187 = arith.mulf %182, %186 : vector<2x32xf32>
    %c7_i32 = arith.constant 7 : i32
    %188 = arith.index_cast %c7_i32 : i32 to index
    %c0_41 = arith.constant 0 : index
    %c0_42 = arith.constant 0 : index
    %189 = vector.load %arg2[%188, %c0_41, %c0_42] : memref<8x2x128xf32, #tpu.memory_space<vmem>>, vector<1x2x128xf32>
    %190 = vector.shape_cast %189 : vector<1x2x128xf32> to vector<2x128xf32>
    %cst_43 = arith.constant dense<0.000000e+00> : vector<2x128xf32>
    %191 = tpu.matmul %187, %3, %cst_43 {dimension_numbers = #tpu.dot_dimension_numbers<[1], [0], [0], [1], [0, 0, 1, 1], [], []>} : vector<2x32xf32>, vector<32x128xf32>, vector<2x128xf32> -> vector<2x128xf32>
    %192 = arith.addf %190, %191 : vector<2x128xf32>
    %193 = vector.extract_strided_slice %192 {offsets = [0, 0], sizes = [2, 64], strides = [1, 1]} : vector<2x128xf32> to vector<2x64xf32>
    %194 = arith.negf %193 : vector<2x64xf32>
    %195 = math.exp %194 : vector<2x64xf32>
    %cst_44 = arith.constant 1.000000e+00 : f32
    %196 = vector.broadcast %cst_44 : f32 to vector<2x64xf32>
    %197 = arith.addf %196, %195 : vector<2x64xf32>
    %198 = arith.divf %196, %197 : vector<2x64xf32>
    %199 = vector.extract_strided_slice %198 {offsets = [0, 0], sizes = [2, 32], strides = [1, 1]} : vector<2x64xf32> to vector<2x32xf32>
    %200 = vector.extract_strided_slice %198 {offsets = [0, 32], sizes = [2, 32], strides = [1, 1]} : vector<2x64xf32> to vector<2x32xf32>
    %201 = vector.extract_strided_slice %192 {offsets = [0, 64], sizes = [2, 32], strides = [1, 1]} : vector<2x128xf32> to vector<2x32xf32>
    %202 = math.tanh %201 : vector<2x32xf32>
    %203 = vector.extract_strided_slice %192 {offsets = [0, 96], sizes = [2, 32], strides = [1, 1]} : vector<2x128xf32> to vector<2x32xf32>
    %204 = arith.negf %203 : vector<2x32xf32>
    %205 = math.exp %204 : vector<2x32xf32>
    %cst_45 = arith.constant 1.000000e+00 : f32
    %206 = vector.broadcast %cst_45 : f32 to vector<2x32xf32>
    %207 = arith.addf %206, %205 : vector<2x32xf32>
    %208 = arith.divf %206, %207 : vector<2x32xf32>
    %209 = arith.mulf %200, %185 : vector<2x32xf32>
    %210 = arith.mulf %199, %202 : vector<2x32xf32>
    %211 = arith.addf %209, %210 : vector<2x32xf32>
    %212 = math.tanh %211 : vector<2x32xf32>
    %213 = arith.mulf %208, %212 : vector<2x32xf32>
    %c8_i32 = arith.constant 8 : i32
    %c0_46 = arith.constant 0 : index
    %c0_47 = arith.constant 0 : index
    %214 = vector.load %arg7[%c0_46, %c0_47] : memref<2x32xf32, #tpu.memory_space<vmem>>, vector<2x32xf32>
    tpu.vector_store %arg7[%c0_46, %c0_47], %213 {strides = array<i32>} : memref<2x32xf32, #tpu.memory_space<vmem>>, vector<2x32xf32>,
    %c0_48 = arith.constant 0 : index
    %c0_49 = arith.constant 0 : index
    %215 = vector.load %arg8[%c0_48, %c0_49] : memref<2x32xf32, #tpu.memory_space<vmem>>, vector<2x32xf32>
    tpu.vector_store %arg8[%c0_48, %c0_49], %211 {strides = array<i32>} : memref<2x32xf32, #tpu.memory_space<vmem>>, vector<2x32xf32>,
    %c0_i32_50 = arith.constant 0 : i32
    %216 = arith.cmpi eq, %arg1, %c0_i32_50 : i32
    %217 = arith.extui %216 : i1 to i32
    %c0_i32_51 = arith.constant 0 : i32
    %218 = arith.cmpi ne, %217, %c0_i32_51 : i32
    scf.if %218 {
      %c0_52 = arith.constant 0 : index
      %c0_53 = arith.constant 0 : index
      %219 = vector.load %arg7[%c0_52, %c0_53] : memref<2x32xf32, #tpu.memory_space<vmem>>, vector<2x32xf32>
      %c0_54 = arith.constant 0 : index
      %c0_55 = arith.constant 0 : index
      %220 = vector.load %arg4[%c0_54, %c0_55] : memref<32x4xf32, #tpu.memory_space<vmem>>, vector<32x4xf32>
      %cst_56 = arith.constant dense<0.000000e+00> : vector<2x4xf32>
      %221 = tpu.matmul %219, %220, %cst_56 {dimension_numbers = #tpu.dot_dimension_numbers<[1], [0], [0], [1], [0, 0, 1, 1], [], []>} : vector<2x32xf32>, vector<32x4xf32>, vector<2x4xf32> -> vector<2x4xf32>
      %c0_57 = arith.constant 0 : index
      %c0_58 = arith.constant 0 : index
      %222 = vector.load %arg5[%c0_57, %c0_58] : memref<1x4xf32, #tpu.memory_space<vmem>>, vector<1x4xf32>
      %223 = vector.broadcast %222 : vector<1x4xf32> to vector<2x4xf32>
      %224 = arith.addf %221, %223 : vector<2x4xf32>
      %c0_59 = arith.constant 0 : index
      %c0_60 = arith.constant 0 : index
      %225 = vector.load %arg6[%c0_59, %c0_60] : memref<2x4xf32, #tpu.memory_space<vmem>>, vector<2x4xf32>
      tpu.vector_store %arg6[%c0_59, %c0_60], %224 {strides = array<i32>} : memref<2x4xf32, #tpu.memory_space<vmem>>, vector<2x4xf32>,
    } else {
    }
    return
  }
  func.func @transform_0(%arg0: i32, %arg1: i32) -> (i32, i32, i32) {
    %c0_i32 = arith.constant 0 : i32
    %c0_i32_0 = arith.constant 0 : i32
    return %arg1, %arg0, %c0_i32 : i32, i32, i32
  }
  func.func @transform_1(%arg0: i32, %arg1: i32) -> (i32, i32) {
    %c0_i32 = arith.constant 0 : i32
    %c0_i32_0 = arith.constant 0 : i32
    %c0_i32_1 = arith.constant 0 : i32
    return %c0_i32, %c0_i32_0 : i32, i32
  }
  func.func @transform_2(%arg0: i32, %arg1: i32) -> (i32, i32) {
    %c0_i32 = arith.constant 0 : i32
    %c0_i32_0 = arith.constant 0 : i32
    %c0_i32_1 = arith.constant 0 : i32
    return %c0_i32, %c0_i32_0 : i32, i32
  }
  func.func @transform_3(%arg0: i32, %arg1: i32) -> (i32, i32) {
    %c0_i32 = arith.constant 0 : i32
    %c0_i32_0 = arith.constant 0 : i32
    %c0_i32_1 = arith.constant 0 : i32
    return %c0_i32, %c0_i32_0 : i32, i32
  }
  func.func @transform_4(%arg0: i32, %arg1: i32) -> (i32, i32) {
    %c0_i32 = arith.constant 0 : i32
    %c0_i32_0 = arith.constant 0 : i32
    return %arg0, %c0_i32 : i32, i32
  }
}

</mosaic_0001>

<llo_original>
// kernel: tpu_custom_call.1
$region0: #{tpu_custom_call.1}
  #allocation0 [shape = 'u32[]', space=smem, size = 0x4, offset = 0x4, fixed_abs, tag = 'smem constant byte address 0x4 - core index']
  #allocation1 [shape = 'u32[144,128]{1,0:T(1,128)}', space=vmem, size = 0x12000, scoped, tag = 'internal scratch']
  #allocation2 [shape = 'f32[2,32]{1,0:T(2,128)}', space=vmem, size = 0x400, scoped, tag = 'scratch operand']
  #allocation3 [shape = 'f32[2,32]{1,0:T(2,128)}', space=vmem, size = 0x400, scoped, tag = 'scratch operand']
  %s0 = inlined_call_operand.hbm [shape: f32[8,2,128], index: 0, kind: input, shape index: {}]
  %s1 = inlined_call_operand.vmem [shape: f32[32,128], index: 1, kind: input, shape index: {}]
  %s2 = inlined_call_operand.vmem [shape: f32[32,4], index: 2, kind: input, shape index: {}]
  %s3 = inlined_call_operand.vmem [shape: f32[1,4], index: 3, kind: input, shape index: {}]
  %s4 = inlined_call_operand.hbm [shape: f32[2,4], index: 4, kind: output, shape index: {}]
  %s5 = sld [smem:[#allocation0]]
  $region38: #{tpu_custom_call.1} parent=0
    _
  %s7 = ssub.s32 1, %s5
  %s8 = scalar_select 0, %s7, %s5
  $region1: #{tpu_custom_call.1} parent=0
    #allocation4 [shape = 'u8[8192]{0}', space=vmem, size = 0x2000, scoped, tag = 'input window, operand 0, single buffered']
    #allocation5 [shape = 's32[1]{0}', space=sflag, size = 0x4, scoped, tag = 'scoped memory for tpu_custom_call.1']
    #allocation6 [shape = 's32[1]{0}', space=sflag, size = 0x4, scoped, tag = 'scoped memory for tpu_custom_call.1']
    #allocation7 [shape = 'u8[1024]{0}', space=vmem, size = 0x400, scoped, tag = 'output window, operand 0, single buffered']
    %9 = vsyncpa [#allocation5], 0
    %10 = vsyncpa [#allocation6], 0
    // Predicated region
    $region2: #{tpu_custom_call.1} parent=1 // pred_check
      _
    $region3: #{tpu_custom_call.1} parent=1 // pred_check_branch
      %12 = sbr.rel (0) target = $region5
    $region4: #{tpu_custom_call.1} parent=1 // pred_region
      %s14 = ssub.s32 256, 256
      %15 = vsyncadd [#allocation5], %s14
      %s16 = sshll.u32 [#allocation4], 4
      %s17 = int_to_ptr.vmem [resolvable:$true] %s16
      %22 = dma.hbm_to_vmem [thread:$0]  %s0, 256, %s17, [#allocation5], 32, 32, 2
    $region5: #{tpu_custom_call.1} parent=1 // pred_fallthru
      _
    // Predicated region
    $region6: #{tpu_custom_call.1} parent=1 // pred_check
      _
    $region7: #{tpu_custom_call.1} parent=1 // pred_check_branch
      %24 = sbr.rel (0) target = $region9
    $region8: #{tpu_custom_call.1} parent=1 // pred_region
      _
    $region9: #{tpu_custom_call.1} parent=1 // pred_fallthru
      _
    // Predicated region
    $region10: #{tpu_custom_call.1} parent=1 // pred_check
      _
    $region11: #{tpu_custom_call.1} parent=1 // pred_check_branch
      %26 = sbr.rel (0) target = $region13
    $region12: #{tpu_custom_call.1} parent=1 // pred_region
      _
    $region13: #{tpu_custom_call.1} parent=1 // pred_fallthru
      _
    // Predicated region
    $region14: #{tpu_custom_call.1} parent=1 // pred_check
      _
    $region15: #{tpu_custom_call.1} parent=1 // pred_check_branch
      %28 = sbr.rel (0) target = $region17
    $region16: #{tpu_custom_call.1} parent=1 // pred_region
      _
    $region17: #{tpu_custom_call.1} parent=1 // pred_fallthru
      _
    // Predicated region
    $region18: #{tpu_custom_call.1} parent=1 // pred_check
      _
    $region19: #{tpu_custom_call.1} parent=1 // pred_check_branch
      %30 = sbr.rel (0) target = $region21
    $region20: #{tpu_custom_call.1} parent=1 // pred_region
      %31 = dma.done [#allocation5], 256
    $region21: #{tpu_custom_call.1} parent=1 // pred_fallthru
      _
    %p32 = scmp.eq.s32.totalorder 0, 0
    // Predicated region
    $region22: #{tpu_custom_call.1} parent=1 // pred_check
      %p33 = pneg %p32
    $region23: #{tpu_custom_call.1} parent=1 // pred_check_branch
      %35 = sbr.rel (%p33) target = $region25
    $region24: #{tpu_custom_call.1} parent=1 // pred_region
      %vm36 = vcmask 254976
      %37 = vst.msk [vmem:[#allocation2] sm:$0x3] %vm36, 0.0
      %38 = vst.msk [vmem:[#allocation3] sm:$0x3] %vm36, 0.0
    $region25: #{tpu_custom_call.1} parent=1 // pred_fallthru
      _
    %v39 = vld [vmem:[%s1] sm:$0xff]
    %v40 = vld [vmem:[%s1 + $0x8] sm:$0xff]
    %v41 = vld [vmem:[%s1 + $0x10] sm:$0xff]
    %v42 = vld [vmem:[%s1 + $0x18] sm:$0xff]
    %v43 = vld [vmem:[#allocation2] sm:$0x3]
    %v44 = vld [vmem:[#allocation3] sm:$0x3]
    %v45 = vld [vmem:[#allocation4] sm:$0x3]
    %vm46 = vcmask 261120
    %v48 = vsel %vm46, %v43, 0
    %50 = vmatprep.subr.mxu0 0.0
    %51 = vmatpush1.msra.mxu0 0.0
    %52 = vmatprep.subr.mxu0 0.0
    %53 = vmatpush1.msra.mxu0 0.0
    %54 = vmatprep.subr.mxu0 0.0
    %55 = vmatpush1.msra.mxu0 0.0
    %56 = vmatprep.subr.mxu0 0.0
    %57 = vmatpush1.msra.mxu0 0.0
    %58 = vmatprep.subr.mxu0 0.0
    %59 = vmatpush1.msra.mxu0 0.0
    %60 = vmatprep.subr.mxu0 0.0
    %61 = vmatpush1.msra.mxu0 0.0
    %62 = vmatprep.subr.mxu0 0.0
    %63 = vmatpush1.msra.mxu0 0.0
    %64 = vmatprep.subr.mxu0 0.0
    %65 = vmatpush1.msra.mxu0 0.0
    %66 = vmatprep.subr.mxu0 0.0
    %67 = vmatpush1.msra.mxu0 0.0
    %68 = vmatprep.subr.mxu0 0.0
    %69 = vmatpush1.msra.mxu0 0.0
    %70 = vmatprep.subr.mxu0 0.0
    %71 = vmatpush1.msra.mxu0 0.0
    %72 = vmatprep.subr.mxu0 0.0
    %73 = vmatpush1.msra.mxu0 0.0
    %74 = vmatprep.subr.mxu0 0.0
    %75 = vmatpush1.msra.mxu0 %v42
    %76 = vmatprep.subr.mxu0 0.0
    %77 = vmatpush1.msra.mxu0 %v41
    %78 = vmatprep.subr.mxu0 0.0
    %79 = vmatpush1.msra.mxu0 %v40
    %80 = vmatprep.subr.mxu0 0.0
    %81 = vmatpush1.msra.mxu0 %v39
    %82 = vmatprep.subr.mxu0 0.0
    %83 = vmatpush2.msra.mxu0 0.0
    %84 = vmatprep.subr.mxu0 0.0
    %85 = vmatpush2.msra.mxu0 0.0
    %86 = vmatprep.subr.mxu0 0.0
    %87 = vmatpush2.msra.mxu0 0.0
    %88 = vmatprep.subr.mxu0 0.0
    %89 = vmatpush2.msra.mxu0 0.0
    %90 = vmatprep.subr.mxu0 0.0
    %91 = vmatpush2.msra.mxu0 0.0
    %92 = vmatprep.subr.mxu0 0.0
    %93 = vmatpush2.msra.mxu0 0.0
    %94 = vmatprep.subr.mxu0 0.0
    %95 = vmatpush2.msra.mxu0 0.0
    %96 = vmatprep.subr.mxu0 0.0
    %97 = vmatpush2.msra.mxu0 0.0
    %98 = vmatprep.subr.mxu0 0.0
    %99 = vmatpush2.msra.mxu0 0.0
    %100 = vmatprep.subr.mxu0 0.0
    %101 = vmatpush2.msra.mxu0 0.0
    %102 = vmatprep.subr.mxu0 0.0
    %103 = vmatpush2.msra.mxu0 0.0
    %104 = vmatprep.subr.mxu0 0.0
    %105 = vmatpush2.msra.mxu0 0.0
    %106 = vmatprep.subr.mxu0 0.0
    %107 = vmatpush2.msra.mxu0 0.0
    %108 = vmatprep.subr.mxu0 0.0
    %109 = vmatpush2.msra.mxu0 0.0
    %110 = vmatprep.subr.mxu0 0.0
    %111 = vmatpush2.msra.mxu0 0.0
    %112 = vmatprep.subr.mxu0 0.0
    %113 = vmatpush2.msra.mxu0 0.0
    %114 = vmatprep.mubr.f32.mxu0 0.0
    %115 = vmatmul.mubr.f32.gmra.mxu0 %v48
    %v116 = vpop.f32.mrf.mxu0
    %v117 = vadd.f32 0.0, %v116
    %v118 = vpop.f32.mrf.mxu0
    %119 = vdwg.mxu0
    %v120 = vadd.f32 %v45, %v117
    %v121 = vxor.u32 %v120, 2147483648
    %v122 = vmul.f32 %v121, 1.442695
    %v123 = vpow.pop %v122
    %v124 = vadd.f32 %v123, 1.0
    %v125 = vrcp.pop %v124
    %v126 = vmul.f32 1.0, %v125
    %v127 = vtanh.pop %v120
    %129 = vrot.lane.b32.xlu0 %v44, 32
    %v130 = vpop.permute.xlu0 %129
    %v132 = vmul.f32 %v126, %v130
    %134 = vrot.lane.b32.xlu0 %v127, 64
    %v135 = vpop.permute.xlu0 %134
    %v137 = vmul.f32 %v126, %v135
    %139 = vrot.lane.b32.xlu0 %v137, 32
    %v140 = vpop.permute.xlu0 %139
    %v142 = vadd.f32 %v132, %v140
    %v143 = vtanh.pop %v142
    %145 = vrot.lane.b32.xlu0 %v143, 64
    %v146 = vpop.permute.xlu0 %145
    %v148 = vmul.f32 %v126, %v146
    %s149 = scalar_lea.vmem [#allocation4], 2
    %v150 = vld [vmem:[%s149] sm:$0x3]
    %152 = vrot.lane.b32.xlu0 %v148, 32
    %v153 = vpop.permute.xlu0 %152
    %v154 = vsel %vm46, %v153, 0
    %156 = vmatprep.subr.mxu0 0.0
    %157 = vmatpush1.msra.mxu0 0.0
    %158 = vmatprep.subr.mxu0 0.0
    %159 = vmatpush1.msra.mxu0 0.0
    %160 = vmatprep.subr.mxu0 0.0
    %161 = vmatpush1.msra.mxu0 0.0
    %162 = vmatprep.subr.mxu0 0.0
    %163 = vmatpush1.msra.mxu0 0.0
    %164 = vmatprep.subr.mxu0 0.0
    %165 = vmatpush1.msra.mxu0 0.0
    %166 = vmatprep.subr.mxu0 0.0
    %167 = vmatpush1.msra.mxu0 0.0
    %168 = vmatprep.subr.mxu0 0.0
    %169 = vmatpush1.msra.mxu0 0.0
    %170 = vmatprep.subr.mxu0 0.0
    %171 = vmatpush1.msra.mxu0 0.0
    %172 = vmatprep.subr.mxu0 0.0
    %173 = vmatpush1.msra.mxu0 0.0
    %174 = vmatprep.subr.mxu0 0.0
    %175 = vmatpush1.msra.mxu0 0.0
    %176 = vmatprep.subr.mxu0 0.0
    %177 = vmatpush1.msra.mxu0 0.0
    %178 = vmatprep.subr.mxu0 0.0
    %179 = vmatpush1.msra.mxu0 0.0
    %180 = vmatprep.subr.mxu0 0.0
    %181 = vmatpush1.msra.mxu0 %v42
    %182 = vmatprep.subr.mxu0 0.0
    %183 = vmatpush1.msra.mxu0 %v41
    %184 = vmatprep.subr.mxu0 0.0
    %185 = vmatpush1.msra.mxu0 %v40
    %186 = vmatprep.subr.mxu0 0.0
    %187 = vmatpush1.msra.mxu0 %v39
    %188 = vmatprep.subr.mxu0 0.0
    %189 = vmatpush2.msra.mxu0 0.0
    %190 = vmatprep.subr.mxu0 0.0
    %191 = vmatpush2.msra.mxu0 0.0
    %192 = vmatprep.subr.mxu0 0.0
    %193 = vmatpush2.msra.mxu0 0.0
    %194 = vmatprep.subr.mxu0 0.0
    %195 = vmatpush2.msra.mxu0 0.0
    %196 = vmatprep.subr.mxu0 0.0
    %197 = vmatpush2.msra.mxu0 0.0
    %198 = vmatprep.subr.mxu0 0.0
    %199 = vmatpush2.msra.mxu0 0.0
    %200 = vmatprep.subr.mxu0 0.0
    %201 = vmatpush2.msra.mxu0 0.0
    %202 = vmatprep.subr.mxu0 0.0
    %203 = vmatpush2.msra.mxu0 0.0
    %204 = vmatprep.subr.mxu0 0.0
    %205 = vmatpush2.msra.mxu0 0.0
    %206 = vmatprep.subr.mxu0 0.0
    %207 = vmatpush2.msra.mxu0 0.0
    %208 = vmatprep.subr.mxu0 0.0
    %209 = vmatpush2.msra.mxu0 0.0
    %210 = vmatprep.subr.mxu0 0.0
    %211 = vmatpush2.msra.mxu0 0.0
    %212 = vmatprep.subr.mxu0 0.0
    %213 = vmatpush2.msra.mxu0 0.0
    %214 = vmatprep.subr.mxu0 0.0
    %215 = vmatpush2.msra.mxu0 0.0
    %216 = vmatprep.subr.mxu0 0.0
    %217 = vmatpush2.msra.mxu0 0.0
    %218 = vmatprep.subr.mxu0 0.0
    %219 = vmatpush2.msra.mxu0 0.0
    %220 = vmatprep.mubr.f32.mxu0 0.0
    %221 = vmatmul.mubr.f32.gmra.mxu0 %v154
    %v222 = vpop.f32.mrf.mxu0
    %v223 = vadd.f32 0.0, %v222
    %v224 = vpop.f32.mrf.mxu0
    %225 = vdwg.mxu0
    %v226 = vadd.f32 %v150, %v223
    %v227 = vxor.u32 %v226, 2147483648
    %v228 = vmul.f32 %v227, 1.442695
    %v229 = vpow.pop %v228
    %v230 = vadd.f32 %v229, 1.0
    %v231 = vrcp.pop %v230
    %v232 = vmul.f32 1.0, %v231
    %v233 = vtanh.pop %v226
    %v234 = vmul.f32 %v232, %v142
    %236 = vrot.lane.b32.xlu0 %v233, 64
    %v237 = vpop.permute.xlu0 %236
    %v239 = vmul.f32 %v232, %v237
    %241 = vrot.lane.b32.xlu0 %v239, 32
    %v242 = vpop.permute.xlu0 %241
    %v244 = vadd.f32 %v234, %v242
    %v245 = vtanh.pop %v244
    %247 = vrot.lane.b32.xlu0 %v245, 64
    %v248 = vpop.permute.xlu0 %247
    %v250 = vmul.f32 %v232, %v248
    %s251 = scalar_lea.vmem [#allocation4], 4
    %v252 = vld [vmem:[%s251] sm:$0x3]
    %254 = vrot.lane.b32.xlu0 %v250, 32
    %v255 = vpop.permute.xlu0 %254
    %v256 = vsel %vm46, %v255, 0
    %258 = vmatprep.subr.mxu0 0.0
    %259 = vmatpush1.msra.mxu0 0.0
    %260 = vmatprep.subr.mxu0 0.0
    %261 = vmatpush1.msra.mxu0 0.0
    %262 = vmatprep.subr.mxu0 0.0
    %263 = vmatpush1.msra.mxu0 0.0
    %264 = vmatprep.subr.mxu0 0.0
    %265 = vmatpush1.msra.mxu0 0.0
    %266 = vmatprep.subr.mxu0 0.0
    %267 = vmatpush1.msra.mxu0 0.0
    %268 = vmatprep.subr.mxu0 0.0
    %269 = vmatpush1.msra.mxu0 0.0
    %270 = vmatprep.subr.mxu0 0.0
    %271 = vmatpush1.msra.mxu0 0.0
    %272 = vmatprep.subr.mxu0 0.0
    %273 = vmatpush1.msra.mxu0 0.0
    %274 = vmatprep.subr.mxu0 0.0
    %275 = vmatpush1.msra.mxu0 0.0
    %276 = vmatprep.subr.mxu0 0.0
    %277 = vmatpush1.msra.mxu0 0.0
    %278 = vmatprep.subr.mxu0 0.0
    %279 = vmatpush1.msra.mxu0 0.0
    %280 = vmatprep.subr.mxu0 0.0
    %281 = vmatpush1.msra.mxu0 0.0
    %282 = vmatprep.subr.mxu0 0.0
    %283 = vmatpush1.msra.mxu0 %v42
    %284 = vmatprep.subr.mxu0 0.0
    %285 = vmatpush1.msra.mxu0 %v41
    %286 = vmatprep.subr.mxu0 0.0
    %287 = vmatpush1.msra.mxu0 %v40
    %288 = vmatprep.subr.mxu0 0.0
    %289 = vmatpush1.msra.mxu0 %v39
    %290 = vmatprep.subr.mxu0 0.0
    %291 = vmatpush2.msra.mxu0 0.0
    %292 = vmatprep.subr.mxu0 0.0
    %293 = vmatpush2.msra.mxu0 0.0
    %294 = vmatprep.subr.mxu0 0.0
    %295 = vmatpush2.msra.mxu0 0.0
    %296 = vmatprep.subr.mxu0 0.0
    %297 = vmatpush2.msra.mxu0 0.0
    %298 = vmatprep.subr.mxu0 0.0
    %299 = vmatpush2.msra.mxu0 0.0
    %300 = vmatprep.subr.mxu0 0.0
    %301 = vmatpush2.msra.mxu0 0.0
    %302 = vmatprep.subr.mxu0 0.0
    %303 = vmatpush2.msra.mxu0 0.0
    %304 = vmatprep.subr.mxu0 0.0
    %305 = vmatpush2.msra.mxu0 0.0
    %306 = vmatprep.subr.mxu0 0.0
    %307 = vmatpush2.msra.mxu0 0.0
    %308 = vmatprep.subr.mxu0 0.0
    %309 = vmatpush2.msra.mxu0 0.0
    %310 = vmatprep.subr.mxu0 0.0
    %311 = vmatpush2.msra.mxu0 0.0
    %312 = vmatprep.subr.mxu0 0.0
    %313 = vmatpush2.msra.mxu0 0.0
    %314 = vmatprep.subr.mxu0 0.0
    %315 = vmatpush2.msra.mxu0 0.0
    %316 = vmatprep.subr.mxu0 0.0
    %317 = vmatpush2.msra.mxu0 0.0
    %318 = vmatprep.subr.mxu0 0.0
    %319 = vmatpush2.msra.mxu0 0.0
    %320 = vmatprep.subr.mxu0 0.0
    %321 = vmatpush2.msra.mxu0 0.0
    %322 = vmatprep.mubr.f32.mxu0 0.0
    %323 = vmatmul.mubr.f32.gmra.mxu0 %v256
    %v324 = vpop.f32.mrf.mxu0
    %v325 = vadd.f32 0.0, %v324
    %v326 = vpop.f32.mrf.mxu0
    %327 = vdwg.mxu0
    %v328 = vadd.f32 %v252, %v325
    %v329 = vxor.u32 %v328, 2147483648
    %v330 = vmul.f32 %v329, 1.442695
    %v331 = vpow.pop %v330
    %v332 = vadd.f32 %v331, 1.0
    %v333 = vrcp.pop %v332
    %v334 = vmul.f32 1.0, %v333
    %v335 = vtanh.pop %v328
    %v336 = vmul.f32 %v334, %v244
    %338 = vrot.lane.b32.xlu0 %v335, 64
    %v339 = vpop.permute.xlu0 %338
    %v341 = vmul.f32 %v334, %v339
    %343 = vrot.lane.b32.xlu0 %v341, 32
    %v344 = vpop.permute.xlu0 %343
    %v346 = vadd.f32 %v336, %v344
    %v347 = vtanh.pop %v346
    %349 = vrot.lane.b32.xlu0 %v347, 64
    %v350 = vpop.permute.xlu0 %349
    %v352 = vmul.f32 %v334, %v350
    %s353 = scalar_lea.vmem [#allocation4], 6
    %v354 = vld [vmem:[%s353] sm:$0x3]
    %356 = vrot.lane.b32.xlu0 %v352, 32
    %v357 = vpop.permute.xlu0 %356
    %v358 = vsel %vm46, %v357, 0
    %360 = vmatprep.subr.mxu0 0.0
    %361 = vmatpush1.msra.mxu0 0.0
    %362 = vmatprep.subr.mxu0 0.0
    %363 = vmatpush1.msra.mxu0 0.0
    %364 = vmatprep.subr.mxu0 0.0
    %365 = vmatpush1.msra.mxu0 0.0
    %366 = vmatprep.subr.mxu0 0.0
    %367 = vmatpush1.msra.mxu0 0.0
    %368 = vmatprep.subr.mxu0 0.0
    %369 = vmatpush1.msra.mxu0 0.0
    %370 = vmatprep.subr.mxu0 0.0
    %371 = vmatpush1.msra.mxu0 0.0
    %372 = vmatprep.subr.mxu0 0.0
    %373 = vmatpush1.msra.mxu0 0.0
    %374 = vmatprep.subr.mxu0 0.0
    %375 = vmatpush1.msra.mxu0 0.0
    %376 = vmatprep.subr.mxu0 0.0
    %377 = vmatpush1.msra.mxu0 0.0
    %378 = vmatprep.subr.mxu0 0.0
    %379 = vmatpush1.msra.mxu0 0.0
    %380 = vmatprep.subr.mxu0 0.0
    %381 = vmatpush1.msra.mxu0 0.0
    %382 = vmatprep.subr.mxu0 0.0
    %383 = vmatpush1.msra.mxu0 0.0
    %384 = vmatprep.subr.mxu0 0.0
    %385 = vmatpush1.msra.mxu0 %v42
    %386 = vmatprep.subr.mxu0 0.0
    %387 = vmatpush1.msra.mxu0 %v41
    %388 = vmatprep.subr.mxu0 0.0
    %389 = vmatpush1.msra.mxu0 %v40
    %390 = vmatprep.subr.mxu0 0.0
    %391 = vmatpush1.msra.mxu0 %v39
    %392 = vmatprep.subr.mxu0 0.0
    %393 = vmatpush2.msra.mxu0 0.0
    %394 = vmatprep.subr.mxu0 0.0
    %395 = vmatpush2.msra.mxu0 0.0
    %396 = vmatprep.subr.mxu0 0.0
    %397 = vmatpush2.msra.mxu0 0.0
    %398 = vmatprep.subr.mxu0 0.0
    %399 = vmatpush2.msra.mxu0 0.0
    %400 = vmatprep.subr.mxu0 0.0
    %401 = vmatpush2.msra.mxu0 0.0
    %402 = vmatprep.subr.mxu0 0.0
    %403 = vmatpush2.msra.mxu0 0.0
    %404 = vmatprep.subr.mxu0 0.0
    %405 = vmatpush2.msra.mxu0 0.0
    %406 = vmatprep.subr.mxu0 0.0
    %407 = vmatpush2.msra.mxu0 0.0
    %408 = vmatprep.subr.mxu0 0.0
    %409 = vmatpush2.msra.mxu0 0.0
    %410 = vmatprep.subr.mxu0 0.0
    %411 = vmatpush2.msra.mxu0 0.0
    %412 = vmatprep.subr.mxu0 0.0
    %413 = vmatpush2.msra.mxu0 0.0
    %414 = vmatprep.subr.mxu0 0.0
    %415 = vmatpush2.msra.mxu0 0.0
    %416 = vmatprep.subr.mxu0 0.0
    %417 = vmatpush2.msra.mxu0 0.0
    %418 = vmatprep.subr.mxu0 0.0
    %419 = vmatpush2.msra.mxu0 0.0
    %420 = vmatprep.subr.mxu0 0.0
    %421 = vmatpush2.msra.mxu0 0.0
    %422 = vmatprep.subr.mxu0 0.0
    %423 = vmatpush2.msra.mxu0 0.0
    %424 = vmatprep.mubr.f32.mxu0 0.0
    %425 = vmatmul.mubr.f32.gmra.mxu0 %v358
    %v426 = vpop.f32.mrf.mxu0
    %v427 = vadd.f32 0.0, %v426
    %v428 = vpop.f32.mrf.mxu0
    %429 = vdwg.mxu0
    %v430 = vadd.f32 %v354, %v427
    %v431 = vxor.u32 %v430, 2147483648
    %v432 = vmul.f32 %v431, 1.442695
    %v433 = vpow.pop %v432
    %v434 = vadd.f32 %v433, 1.0
    %v435 = vrcp.pop %v434
    %v436 = vmul.f32 1.0, %v435
    %v437 = vtanh.pop %v430
    %v438 = vmul.f32 %v436, %v346
    %440 = vrot.lane.b32.xlu0 %v437, 64
    %v441 = vpop.permute.xlu0 %440
    %v443 = vmul.f32 %v436, %v441
    %445 = vrot.lane.b32.xlu0 %v443, 32
    %v446 = vpop.permute.xlu0 %445
    %v448 = vadd.f32 %v438, %v446
    %v449 = vtanh.pop %v448
    %451 = vrot.lane.b32.xlu0 %v449, 64
    %v452 = vpop.permute.xlu0 %451
    %v454 = vmul.f32 %v436, %v452
    %s455 = scalar_lea.vmem [#allocation4], 8
    %v456 = vld [vmem:[%s455] sm:$0x3]
    %458 = vrot.lane.b32.xlu0 %v454, 32
    %v459 = vpop.permute.xlu0 %458
    %v460 = vsel %vm46, %v459, 0
    %462 = vmatprep.subr.mxu0 0.0
    %463 = vmatpush1.msra.mxu0 0.0
    %464 = vmatprep.subr.mxu0 0.0
    %465 = vmatpush1.msra.mxu0 0.0
    %466 = vmatprep.subr.mxu0 0.0
    %467 = vmatpush1.msra.mxu0 0.0
    %468 = vmatprep.subr.mxu0 0.0
    %469 = vmatpush1.msra.mxu0 0.0
    %470 = vmatprep.subr.mxu0 0.0
    %471 = vmatpush1.msra.mxu0 0.0
    %472 = vmatprep.subr.mxu0 0.0
    %473 = vmatpush1.msra.mxu0 0.0
    %474 = vmatprep.subr.mxu0 0.0
    %475 = vmatpush1.msra.mxu0 0.0
    %476 = vmatprep.subr.mxu0 0.0
    %477 = vmatpush1.msra.mxu0 0.0
    %478 = vmatprep.subr.mxu0 0.0
    %479 = vmatpush1.msra.mxu0 0.0
    %480 = vmatprep.subr.mxu0 0.0
    %481 = vmatpush1.msra.mxu0 0.0
    %482 = vmatprep.subr.mxu0 0.0
    %483 = vmatpush1.msra.mxu0 0.0
    %484 = vmatprep.subr.mxu0 0.0
    %485 = vmatpush1.msra.mxu0 0.0
    %486 = vmatprep.subr.mxu0 0.0
    %487 = vmatpush1.msra.mxu0 %v42
    %488 = vmatprep.subr.mxu0 0.0
    %489 = vmatpush1.msra.mxu0 %v41
    %490 = vmatprep.subr.mxu0 0.0
    %491 = vmatpush1.msra.mxu0 %v40
    %492 = vmatprep.subr.mxu0 0.0
    %493 = vmatpush1.msra.mxu0 %v39
    %494 = vmatprep.subr.mxu0 0.0
    %495 = vmatpush2.msra.mxu0 0.0
    %496 = vmatprep.subr.mxu0 0.0
    %497 = vmatpush2.msra.mxu0 0.0
    %498 = vmatprep.subr.mxu0 0.0
    %499 = vmatpush2.msra.mxu0 0.0
    %500 = vmatprep.subr.mxu0 0.0
    %501 = vmatpush2.msra.mxu0 0.0
    %502 = vmatprep.subr.mxu0 0.0
    %503 = vmatpush2.msra.mxu0 0.0
    %504 = vmatprep.subr.mxu0 0.0
    %505 = vmatpush2.msra.mxu0 0.0
    %506 = vmatprep.subr.mxu0 0.0
    %507 = vmatpush2.msra.mxu0 0.0
    %508 = vmatprep.subr.mxu0 0.0
    %509 = vmatpush2.msra.mxu0 0.0
    %510 = vmatprep.subr.mxu0 0.0
    %511 = vmatpush2.msra.mxu0 0.0
    %512 = vmatprep.subr.mxu0 0.0
    %513 = vmatpush2.msra.mxu0 0.0
    %514 = vmatprep.subr.mxu0 0.0
    %515 = vmatpush2.msra.mxu0 0.0
    %516 = vmatprep.subr.mxu0 0.0
    %517 = vmatpush2.msra.mxu0 0.0
    %518 = vmatprep.subr.mxu0 0.0
    %519 = vmatpush2.msra.mxu0 0.0
    %520 = vmatprep.subr.mxu0 0.0
    %521 = vmatpush2.msra.mxu0 0.0
    %522 = vmatprep.subr.mxu0 0.0
    %523 = vmatpush2.msra.mxu0 0.0
    %524 = vmatprep.subr.mxu0 0.0
    %525 = vmatpush2.msra.mxu0 0.0
    %526 = vmatprep.mubr.f32.mxu0 0.0
    %527 = vmatmul.mubr.f32.gmra.mxu0 %v460
    %v528 = vpop.f32.mrf.mxu0
    %v529 = vadd.f32 0.0, %v528
    %v530 = vpop.f32.mrf.mxu0
    %531 = vdwg.mxu0
    %v532 = vadd.f32 %v456, %v529
    %v533 = vxor.u32 %v532, 2147483648
    %v534 = vmul.f32 %v533, 1.442695
    %v535 = vpow.pop %v534
    %v536 = vadd.f32 %v535, 1.0
    %v537 = vrcp.pop %v536
    %v538 = vmul.f32 1.0, %v537
    %v539 = vtanh.pop %v532
    %v540 = vmul.f32 %v538, %v448
    %542 = vrot.lane.b32.xlu0 %v539, 64
    %v543 = vpop.permute.xlu0 %542
    %v545 = vmul.f32 %v538, %v543
    %547 = vrot.lane.b32.xlu0 %v545, 32
    %v548 = vpop.permute.xlu0 %547
    %v550 = vadd.f32 %v540, %v548
    %v551 = vtanh.pop %v550
    %553 = vrot.lane.b32.xlu0 %v551, 64
    %v554 = vpop.permute.xlu0 %553
    %v556 = vmul.f32 %v538, %v554
    %s557 = scalar_lea.vmem [#allocation4], 10
    %v558 = vld [vmem:[%s557] sm:$0x3]
    %560 = vrot.lane.b32.xlu0 %v556, 32
    %v561 = vpop.permute.xlu0 %560
    %v562 = vsel %vm46, %v561, 0
    %564 = vmatprep.subr.mxu0 0.0
    %565 = vmatpush1.msra.mxu0 0.0
    %566 = vmatprep.subr.mxu0 0.0
    %567 = vmatpush1.msra.mxu0 0.0
    %568 = vmatprep.subr.mxu0 0.0
    %569 = vmatpush1.msra.mxu0 0.0
    %570 = vmatprep.subr.mxu0 0.0
    %571 = vmatpush1.msra.mxu0 0.0
    %572 = vmatprep.subr.mxu0 0.0
    %573 = vmatpush1.msra.mxu0 0.0
    %574 = vmatprep.subr.mxu0 0.0
    %575 = vmatpush1.msra.mxu0 0.0
    %576 = vmatprep.subr.mxu0 0.0
    %577 = vmatpush1.msra.mxu0 0.0
    %578 = vmatprep.subr.mxu0 0.0
    %579 = vmatpush1.msra.mxu0 0.0
    %580 = vmatprep.subr.mxu0 0.0
    %581 = vmatpush1.msra.mxu0 0.0
    %582 = vmatprep.subr.mxu0 0.0
    %583 = vmatpush1.msra.mxu0 0.0
    %584 = vmatprep.subr.mxu0 0.0
    %585 = vmatpush1.msra.mxu0 0.0
    %586 = vmatprep.subr.mxu0 0.0
    %587 = vmatpush1.msra.mxu0 0.0
    %588 = vmatprep.subr.mxu0 0.0
    %589 = vmatpush1.msra.mxu0 %v42
    %590 = vmatprep.subr.mxu0 0.0
    %591 = vmatpush1.msra.mxu0 %v41
    %592 = vmatprep.subr.mxu0 0.0
    %593 = vmatpush1.msra.mxu0 %v40
    %594 = vmatprep.subr.mxu0 0.0
    %595 = vmatpush1.msra.mxu0 %v39
    %596 = vmatprep.subr.mxu0 0.0
    %597 = vmatpush2.msra.mxu0 0.0
    %598 = vmatprep.subr.mxu0 0.0
    %599 = vmatpush2.msra.mxu0 0.0
    %600 = vmatprep.subr.mxu0 0.0
    %601 = vmatpush2.msra.mxu0 0.0
    %602 = vmatprep.subr.mxu0 0.0
    %603 = vmatpush2.msra.mxu0 0.0
    %604 = vmatprep.subr.mxu0 0.0
    %605 = vmatpush2.msra.mxu0 0.0
    %606 = vmatprep.subr.mxu0 0.0
    %607 = vmatpush2.msra.mxu0 0.0
    %608 = vmatprep.subr.mxu0 0.0
    %609 = vmatpush2.msra.mxu0 0.0
    %610 = vmatprep.subr.mxu0 0.0
    %611 = vmatpush2.msra.mxu0 0.0
    %612 = vmatprep.subr.mxu0 0.0
    %613 = vmatpush2.msra.mxu0 0.0
    %614 = vmatprep.subr.mxu0 0.0
    %615 = vmatpush2.msra.mxu0 0.0
    %616 = vmatprep.subr.mxu0 0.0
    %617 = vmatpush2.msra.mxu0 0.0
    %618 = vmatprep.subr.mxu0 0.0
    %619 = vmatpush2.msra.mxu0 0.0
    %620 = vmatprep.subr.mxu0 0.0
    %621 = vmatpush2.msra.mxu0 0.0
    %622 = vmatprep.subr.mxu0 0.0
    %623 = vmatpush2.msra.mxu0 0.0
    %624 = vmatprep.subr.mxu0 0.0
    %625 = vmatpush2.msra.mxu0 0.0
    %626 = vmatprep.subr.mxu0 0.0
    %627 = vmatpush2.msra.mxu0 0.0
    %628 = vmatprep.mubr.f32.mxu0 0.0
    %629 = vmatmul.mubr.f32.gmra.mxu0 %v562
    %v630 = vpop.f32.mrf.mxu0
    %v631 = vadd.f32 0.0, %v630
    %v632 = vpop.f32.mrf.mxu0
    %633 = vdwg.mxu0
    %v634 = vadd.f32 %v558, %v631
    %v635 = vxor.u32 %v634, 2147483648
    %v636 = vmul.f32 %v635, 1.442695
    %v637 = vpow.pop %v636
    %v638 = vadd.f32 %v637, 1.0
    %v639 = vrcp.pop %v638
    %v640 = vmul.f32 1.0, %v639
    %v641 = vtanh.pop %v634
    %v642 = vmul.f32 %v640, %v550
    %644 = vrot.lane.b32.xlu0 %v641, 64
    %v645 = vpop.permute.xlu0 %644
    %v647 = vmul.f32 %v640, %v645
    %649 = vrot.lane.b32.xlu0 %v647, 32
    %v650 = vpop.permute.xlu0 %649
    %v652 = vadd.f32 %v642, %v650
    %v653 = vtanh.pop %v652
    %655 = vrot.lane.b32.xlu0 %v653, 64
    %v656 = vpop.permute.xlu0 %655
    %v658 = vmul.f32 %v640, %v656
    %s659 = scalar_lea.vmem [#allocation4], 12
    %v660 = vld [vmem:[%s659] sm:$0x3]
    %662 = vrot.lane.b32.xlu0 %v658, 32
    %v663 = vpop.permute.xlu0 %662
    %v664 = vsel %vm46, %v663, 0
    %666 = vmatprep.subr.mxu0 0.0
    %667 = vmatpush1.msra.mxu0 0.0
    %668 = vmatprep.subr.mxu0 0.0
    %669 = vmatpush1.msra.mxu0 0.0
    %670 = vmatprep.subr.mxu0 0.0
    %671 = vmatpush1.msra.mxu0 0.0
    %672 = vmatprep.subr.mxu0 0.0
    %673 = vmatpush1.msra.mxu0 0.0
    %674 = vmatprep.subr.mxu0 0.0
    %675 = vmatpush1.msra.mxu0 0.0
    %676 = vmatprep.subr.mxu0 0.0
    %677 = vmatpush1.msra.mxu0 0.0
    %678 = vmatprep.subr.mxu0 0.0
    %679 = vmatpush1.msra.mxu0 0.0
    %680 = vmatprep.subr.mxu0 0.0
    %681 = vmatpush1.msra.mxu0 0.0
    %682 = vmatprep.subr.mxu0 0.0
    %683 = vmatpush1.msra.mxu0 0.0
    %684 = vmatprep.subr.mxu0 0.0
    %685 = vmatpush1.msra.mxu0 0.0
    %686 = vmatprep.subr.mxu0 0.0
    %687 = vmatpush1.msra.mxu0 0.0
    %688 = vmatprep.subr.mxu0 0.0
    %689 = vmatpush1.msra.mxu0 0.0
    %690 = vmatprep.subr.mxu0 0.0
    %691 = vmatpush1.msra.mxu0 %v42
    %692 = vmatprep.subr.mxu0 0.0
    %693 = vmatpush1.msra.mxu0 %v41
    %694 = vmatprep.subr.mxu0 0.0
    %695 = vmatpush1.msra.mxu0 %v40
    %696 = vmatprep.subr.mxu0 0.0
    %697 = vmatpush1.msra.mxu0 %v39
    %698 = vmatprep.subr.mxu0 0.0
    %699 = vmatpush2.msra.mxu0 0.0
    %700 = vmatprep.subr.mxu0 0.0
    %701 = vmatpush2.msra.mxu0 0.0
    %702 = vmatprep.subr.mxu0 0.0
    %703 = vmatpush2.msra.mxu0 0.0
    %704 = vmatprep.subr.mxu0 0.0
    %705 = vmatpush2.msra.mxu0 0.0
    %706 = vmatprep.subr.mxu0 0.0
    %707 = vmatpush2.msra.mxu0 0.0
    %708 = vmatprep.subr.mxu0 0.0
    %709 = vmatpush2.msra.mxu0 0.0
    %710 = vmatprep.subr.mxu0 0.0
    %711 = vmatpush2.msra.mxu0 0.0
    %712 = vmatprep.subr.mxu0 0.0
    %713 = vmatpush2.msra.mxu0 0.0
    %714 = vmatprep.subr.mxu0 0.0
    %715 = vmatpush2.msra.mxu0 0.0
    %716 = vmatprep.subr.mxu0 0.0
    %717 = vmatpush2.msra.mxu0 0.0
    %718 = vmatprep.subr.mxu0 0.0
    %719 = vmatpush2.msra.mxu0 0.0
    %720 = vmatprep.subr.mxu0 0.0
    %721 = vmatpush2.msra.mxu0 0.0
    %722 = vmatprep.subr.mxu0 0.0
    %723 = vmatpush2.msra.mxu0 0.0
    %724 = vmatprep.subr.mxu0 0.0
    %725 = vmatpush2.msra.mxu0 0.0
    %726 = vmatprep.subr.mxu0 0.0
    %727 = vmatpush2.msra.mxu0 0.0
    %728 = vmatprep.subr.mxu0 0.0
    %729 = vmatpush2.msra.mxu0 0.0
    %730 = vmatprep.mubr.f32.mxu0 0.0
    %731 = vmatmul.mubr.f32.gmra.mxu0 %v664
    %v732 = vpop.f32.mrf.mxu0
    %v733 = vadd.f32 0.0, %v732
    %v734 = vpop.f32.mrf.mxu0
    %735 = vdwg.mxu0
    %v736 = vadd.f32 %v660, %v733
    %v737 = vxor.u32 %v736, 2147483648
    %v738 = vmul.f32 %v737, 1.442695
    %v739 = vpow.pop %v738
    %v740 = vadd.f32 %v739, 1.0
    %v741 = vrcp.pop %v740
    %v742 = vmul.f32 1.0, %v741
    %v743 = vtanh.pop %v736
    %v744 = vmul.f32 %v742, %v652
    %746 = vrot.lane.b32.xlu0 %v743, 64
    %v747 = vpop.permute.xlu0 %746
    %v749 = vmul.f32 %v742, %v747
    %751 = vrot.lane.b32.xlu0 %v749, 32
    %v752 = vpop.permute.xlu0 %751
    %v754 = vadd.f32 %v744, %v752
    %v755 = vtanh.pop %v754
    %757 = vrot.lane.b32.xlu0 %v755, 64
    %v758 = vpop.permute.xlu0 %757
    %v760 = vmul.f32 %v742, %v758
    %s761 = scalar_lea.vmem [#allocation4], 14
    %v762 = vld [vmem:[%s761] sm:$0x3]
    %764 = vrot.lane.b32.xlu0 %v760, 32
    %v765 = vpop.permute.xlu0 %764
    %v766 = vsel %vm46, %v765, 0
    %768 = vmatprep.subr.mxu0 0.0
    %769 = vmatpush1.msra.mxu0 0.0
    %770 = vmatprep.subr.mxu0 0.0
    %771 = vmatpush1.msra.mxu0 0.0
    %772 = vmatprep.subr.mxu0 0.0
    %773 = vmatpush1.msra.mxu0 0.0
    %774 = vmatprep.subr.mxu0 0.0
    %775 = vmatpush1.msra.mxu0 0.0
    %776 = vmatprep.subr.mxu0 0.0
    %777 = vmatpush1.msra.mxu0 0.0
    %778 = vmatprep.subr.mxu0 0.0
    %779 = vmatpush1.msra.mxu0 0.0
    %780 = vmatprep.subr.mxu0 0.0
    %781 = vmatpush1.msra.mxu0 0.0
    %782 = vmatprep.subr.mxu0 0.0
    %783 = vmatpush1.msra.mxu0 0.0
    %784 = vmatprep.subr.mxu0 0.0
    %785 = vmatpush1.msra.mxu0 0.0
    %786 = vmatprep.subr.mxu0 0.0
    %787 = vmatpush1.msra.mxu0 0.0
    %788 = vmatprep.subr.mxu0 0.0
    %789 = vmatpush1.msra.mxu0 0.0
    %790 = vmatprep.subr.mxu0 0.0
    %791 = vmatpush1.msra.mxu0 0.0
    %792 = vmatprep.subr.mxu0 0.0
    %793 = vmatpush1.msra.mxu0 %v42
    %794 = vmatprep.subr.mxu0 0.0
    %795 = vmatpush1.msra.mxu0 %v41
    %796 = vmatprep.subr.mxu0 0.0
    %797 = vmatpush1.msra.mxu0 %v40
    %798 = vmatprep.subr.mxu0 0.0
    %799 = vmatpush1.msra.mxu0 %v39
    %800 = vmatprep.subr.mxu0 0.0
    %801 = vmatpush2.msra.mxu0 0.0
    %802 = vmatprep.subr.mxu0 0.0
    %803 = vmatpush2.msra.mxu0 0.0
    %804 = vmatprep.subr.mxu0 0.0
    %805 = vmatpush2.msra.mxu0 0.0
    %806 = vmatprep.subr.mxu0 0.0
    %807 = vmatpush2.msra.mxu0 0.0
    %808 = vmatprep.subr.mxu0 0.0
    %809 = vmatpush2.msra.mxu0 0.0
    %810 = vmatprep.subr.mxu0 0.0
    %811 = vmatpush2.msra.mxu0 0.0
    %812 = vmatprep.subr.mxu0 0.0
    %813 = vmatpush2.msra.mxu0 0.0
    %814 = vmatprep.subr.mxu0 0.0
    %815 = vmatpush2.msra.mxu0 0.0
    %816 = vmatprep.subr.mxu0 0.0
    %817 = vmatpush2.msra.mxu0 0.0
    %818 = vmatprep.subr.mxu0 0.0
    %819 = vmatpush2.msra.mxu0 0.0
    %820 = vmatprep.subr.mxu0 0.0
    %821 = vmatpush2.msra.mxu0 0.0
    %822 = vmatprep.subr.mxu0 0.0
    %823 = vmatpush2.msra.mxu0 0.0
    %824 = vmatprep.subr.mxu0 0.0
    %825 = vmatpush2.msra.mxu0 0.0
    %826 = vmatprep.subr.mxu0 0.0
    %827 = vmatpush2.msra.mxu0 0.0
    %828 = vmatprep.subr.mxu0 0.0
    %829 = vmatpush2.msra.mxu0 0.0
    %830 = vmatprep.subr.mxu0 0.0
    %831 = vmatpush2.msra.mxu0 0.0
    %832 = vmatprep.mubr.f32.mxu0 0.0
    %833 = vmatmul.mubr.f32.gmra.mxu0 %v766
    %v834 = vpop.f32.mrf.mxu0
    %v835 = vadd.f32 0.0, %v834
    %v836 = vpop.f32.mrf.mxu0
    %837 = vdwg.mxu0
    %v838 = vadd.f32 %v762, %v835
    %v839 = vxor.u32 %v838, 2147483648
    %v840 = vmul.f32 %v839, 1.442695
    %v841 = vpow.pop %v840
    %v842 = vadd.f32 %v841, 1.0
    %v843 = vrcp.pop %v842
    %v844 = vmul.f32 1.0, %v843
    %v845 = vtanh.pop %v838
    %v846 = vmul.f32 %v844, %v754
    %848 = vrot.lane.b32.xlu0 %v845, 64
    %v849 = vpop.permute.xlu0 %848
    %v851 = vmul.f32 %v844, %v849
    %853 = vrot.lane.b32.xlu0 %v851, 32
    %v854 = vpop.permute.xlu0 %853
    %v856 = vadd.f32 %v846, %v854
    %v857 = vtanh.pop %v856
    %859 = vrot.lane.b32.xlu0 %v857, 64
    %v860 = vpop.permute.xlu0 %859
    %v862 = vmul.f32 %v844, %v860
    %864 = vrot.lane.b32.xlu0 %v862, 32
    %v865 = vpop.permute.xlu0 %864
    %vm867 = vcmask 254976
    %868 = vst.msk [vmem:[#allocation2] sm:$0x3] %vm867, %v865
    %870 = vrot.lane.b32.xlu0 %v856, 96
    %v871 = vpop.permute.xlu0 %870
    %873 = vst.msk [vmem:[#allocation3] sm:$0x3] %vm867, %v871
    // Predicated region
    $region26: #{tpu_custom_call.1} parent=1 // pred_check
      %p874 = pneg %p32
    $region27: #{tpu_custom_call.1} parent=1 // pred_check_branch
      %876 = sbr.rel (%p874) target = $region29
    $region28: #{tpu_custom_call.1} parent=1 // pred_region
      %v877 = vld [vmem:[#allocation2] sm:$0x3]
      %v878 = vld [vmem:[%s2] sm:$0xff]
      %v879 = vld [vmem:[%s2 + $0x8] sm:$0xff]
      %v880 = vld [vmem:[%s2 + $0x10] sm:$0xff]
      %v881 = vld [vmem:[%s2 + $0x18] sm:$0xff]
      %v882 = vld [vmem:[%s3] sm:$0x1]
      %v884 = vlaneseq
      %v885 = vshrl.u32 %v884, 7
      %v886 = vsub.s32 0, %v885
      %v887 = vrot.slane %v882, %v886
      %v890 = vsel %vm46, %v877, 0
      %892 = vmatprep.subr.mxu0 0.0
      %893 = vmatpush1.msra.mxu0 0.0
      %894 = vmatprep.subr.mxu0 0.0
      %895 = vmatpush1.msra.mxu0 0.0
      %896 = vmatprep.subr.mxu0 0.0
      %897 = vmatpush1.msra.mxu0 0.0
      %898 = vmatprep.subr.mxu0 0.0
      %899 = vmatpush1.msra.mxu0 0.0
      %900 = vmatprep.subr.mxu0 0.0
      %901 = vmatpush1.msra.mxu0 0.0
      %902 = vmatprep.subr.mxu0 0.0
      %903 = vmatpush1.msra.mxu0 0.0
      %904 = vmatprep.subr.mxu0 0.0
      %905 = vmatpush1.msra.mxu0 0.0
      %906 = vmatprep.subr.mxu0 0.0
      %907 = vmatpush1.msra.mxu0 0.0
      %908 = vmatprep.subr.mxu0 0.0
      %909 = vmatpush1.msra.mxu0 0.0
      %910 = vmatprep.subr.mxu0 0.0
      %911 = vmatpush1.msra.mxu0 0.0
      %912 = vmatprep.subr.mxu0 0.0
      %913 = vmatpush1.msra.mxu0 0.0
      %914 = vmatprep.subr.mxu0 0.0
      %915 = vmatpush1.msra.mxu0 0.0
      %916 = vmatprep.subr.mxu0 0.0
      %917 = vmatpush1.msra.mxu0 %v881
      %918 = vmatprep.subr.mxu0 0.0
      %919 = vmatpush1.msra.mxu0 %v880
      %920 = vmatprep.subr.mxu0 0.0
      %921 = vmatpush1.msra.mxu0 %v879
      %922 = vmatprep.subr.mxu0 0.0
      %923 = vmatpush1.msra.mxu0 %v878
      %924 = vmatprep.subr.mxu0 0.0
      %925 = vmatpush2.msra.mxu0 0.0
      %926 = vmatprep.subr.mxu0 0.0
      %927 = vmatpush2.msra.mxu0 0.0
      %928 = vmatprep.subr.mxu0 0.0
      %929 = vmatpush2.msra.mxu0 0.0
      %930 = vmatprep.subr.mxu0 0.0
      %931 = vmatpush2.msra.mxu0 0.0
      %932 = vmatprep.subr.mxu0 0.0
      %933 = vmatpush2.msra.mxu0 0.0
      %934 = vmatprep.subr.mxu0 0.0
      %935 = vmatpush2.msra.mxu0 0.0
      %936 = vmatprep.subr.mxu0 0.0
      %937 = vmatpush2.msra.mxu0 0.0
      %938 = vmatprep.subr.mxu0 0.0
      %939 = vmatpush2.msra.mxu0 0.0
      %940 = vmatprep.subr.mxu0 0.0
      %941 = vmatpush2.msra.mxu0 0.0
      %942 = vmatprep.subr.mxu0 0.0
      %943 = vmatpush2.msra.mxu0 0.0
      %944 = vmatprep.subr.mxu0 0.0
      %945 = vmatpush2.msra.mxu0 0.0
      %946 = vmatprep.subr.mxu0 0.0
      %947 = vmatpush2.msra.mxu0 0.0
      %948 = vmatprep.subr.mxu0 0.0
      %949 = vmatpush2.msra.mxu0 0.0
      %950 = vmatprep.subr.mxu0 0.0
      %951 = vmatpush2.msra.mxu0 0.0
      %952 = vmatprep.subr.mxu0 0.0
      %953 = vmatpush2.msra.mxu0 0.0
      %954 = vmatprep.subr.mxu0 0.0
      %955 = vmatpush2.msra.mxu0 0.0
      %956 = vmatprep.mubr.f32.mxu0 0.0
      %957 = vmatmul.mubr.f32.gmra.mxu0 %v890
      %v958 = vpop.f32.mrf.mxu0
      %v959 = vadd.f32 %v887, %v958
      %v960 = vpop.f32.mrf.mxu0
      %961 = vdwg.mxu0
      %vm962 = vcmask 25600
      %963 = vst.msk [vmem:[#allocation7] sm:$0x3] %vm962, %v959
    $region29: #{tpu_custom_call.1} parent=1 // pred_fallthru
      _
    // Predicated region
    $region30: #{tpu_custom_call.1} parent=1 // pred_check
      _
    $region31: #{tpu_custom_call.1} parent=1 // pred_check_branch
      %965 = sbr.rel (0) target = $region33
    $region32: #{tpu_custom_call.1} parent=1 // pred_region
      %s967 = ssub.s32 32, 32
      %968 = vsyncadd [#allocation6], %s967
      %s970 = sshll.u32 [#allocation7], 4
      %s971 = int_to_ptr.vmem [resolvable:$true] %s970
      %973 = dma.vmem_to_hbm [thread:$0]  %s971, 32, %s4, [#allocation6]
    $region33: #{tpu_custom_call.1} parent=1 // pred_fallthru
      _
    // Predicated region
    $region34: #{tpu_custom_call.1} parent=1 // pred_check
      _
    $region35: #{tpu_custom_call.1} parent=1 // pred_check_branch
      %975 = sbr.rel (0) target = $region37
    $region36: #{tpu_custom_call.1} parent=1 // pred_region
      %976 = dma.done [#allocation6], 32
    $region37: #{tpu_custom_call.1} parent=1 // pred_fallthru
      _
    %977 = vsyncpa [#allocation5], 1
    %978 = vsyncpa [#allocation6], 1

// kernel: tpu_custom_call.1
$region0: #{tpu_custom_call.1}
  #allocation0 [shape = 'u32[]', space=smem, size = 0x4, offset = 0x4, fixed_abs, tag = 'smem constant byte address 0x4 - core index']
  #allocation1 [shape = 'u32[144,128]{1,0:T(1,128)}', space=vmem, size = 0x12000, scoped, tag = 'internal scratch']
  #allocation2 [shape = 'f32[2,32]{1,0:T(2,128)}', space=vmem, size = 0x400, scoped, tag = 'scratch operand']
  #allocation3 [shape = 'f32[2,32]{1,0:T(2,128)}', space=vmem, size = 0x400, scoped, tag = 'scratch operand']
  %s0 = inlined_call_operand.hbm [shape: f32[8,2,128], index: 0, kind: input, shape index: {}]
  %s1 = inlined_call_operand.vmem [shape: f32[32,128], index: 1, kind: input, shape index: {}]
  %s2 = inlined_call_operand.vmem [shape: f32[32,4], index: 2, kind: input, shape index: {}]
  %s3 = inlined_call_operand.vmem [shape: f32[1,4], index: 3, kind: input, shape index: {}]
  %s4 = inlined_call_operand.hbm [shape: f32[2,4], index: 4, kind: output, shape index: {}]
  %s5 = sld [smem:[#allocation0]]
  $region38: #{tpu_custom_call.1} parent=0
    _
  %s7 = ssub.s32 1, %s5
  %s8 = scalar_select 0, %s7, %s5
  $region1: #{tpu_custom_call.1} parent=0
    #allocation4 [shape = 'u8[8192]{0}', space=vmem, size = 0x2000, scoped, tag = 'input window, operand 0, single buffered']
    #allocation5 [shape = 's32[1]{0}', space=sflag, size = 0x4, scoped, tag = 'scoped memory for tpu_custom_call.1']
    #allocation6 [shape = 's32[1]{0}', space=sflag, size = 0x4, scoped, tag = 'scoped memory for tpu_custom_call.1']
    #allocation7 [shape = 'u8[1024]{0}', space=vmem, size = 0x400, scoped, tag = 'output window, operand 0, single buffered']
    %9 = vsyncpa [#allocation5], 0
    %10 = vsyncpa [#allocation6], 0
    // Predicated region
    $region2: #{tpu_custom_call.1} parent=1 // pred_check
      _
    $region3: #{tpu_custom_call.1} parent=1 // pred_check_branch
      %12 = sbr.rel (0) target = $region5
    $region4: #{tpu_custom_call.1} parent=1 // pred_region
      %s14 = ssub.s32 256, 256
      %15 = vsyncadd [#allocation5], %s14
      %s16 = sshll.u32 [#allocation4], 4
      %s17 = int_to_ptr.vmem [resolvable:$true] %s16
      %22 = dma.hbm_to_vmem [thread:$0]  %s0, 256, %s17, [#allocation5], 32, 32, 2
    $region5: #{tpu_custom_call.1} parent=1 // pred_fallthru
      _
    // Predicated region
    $region6: #{tpu_custom_call.1} parent=1 // pred_check
      _
    $region7: #{tpu_custom_call.1} parent=1 // pred_check_branch
      %24 = sbr.rel (0) target = $region9
    $region8: #{tpu_custom_call.1} parent=1 // pred_region
      _
    $region9: #{tpu_custom_call.1} parent=1 // pred_fallthru
      _
    // Predicated region
    $region10: #{tpu_custom_call.1} parent=1 // pred_check
      _
    $region11: #{tpu_custom_call.1} parent=1 // pred_check_branch
      %26 = sbr.rel (0) target = $region13
    $region12: #{tpu_custom_call.1} parent=1 // pred_region
      _
    $region13: #{tpu_custom_call.1} parent=1 // pred_fallthru
      _
    // Predicated region
    $region14: #{tpu_custom_call.1} parent=1 // pred_check
      _
    $region15: #{tpu_custom_call.1} parent=1 // pred_check_branch
      %28 = sbr.rel (0) target = $region17
    $region16: #{tpu_custom_call.1} parent=1 // pred_region
      _
    $region17: #{tpu_custom_call.1} parent=1 // pred_fallthru
      _
    // Predicated region
    $region18: #{tpu_custom_call.1} parent=1 // pred_check
      _
    $region19: #{tpu_custom_call.1} parent=1 // pred_check_branch
      %30 = sbr.rel (0) target = $region21
    $region20: #{tpu_custom_call.1} parent=1 // pred_region
      %31 = dma.done [#allocation5], 256
    $region21: #{tpu_custom_call.1} parent=1 // pred_fallthru
      _
    %p32 = scmp.eq.s32.totalorder 0, 0
    // Predicated region
    $region22: #{tpu_custom_call.1} parent=1 // pred_check
      %p33 = pneg %p32
    $region23: #{tpu_custom_call.1} parent=1 // pred_check_branch
      %35 = sbr.rel (%p33) target = $region25
    $region24: #{tpu_custom_call.1} parent=1 // pred_region
      %vm36 = vcmask 254976
      %37 = vst.msk [vmem:[#allocation2] sm:$0x3] %vm36, 0.0
      %38 = vst.msk [vmem:[#allocation3] sm:$0x3] %vm36, 0.0
    $region25: #{tpu_custom_call.1} parent=1 // pred_fallthru
      _
    %v39 = vld [vmem:[%s1] sm:$0xff]
    %v40 = vld [vmem:[%s1 + $0x8] sm:$0xff]
    %v41 = vld [vmem:[%s1 + $0x10] sm:$0xff]
    %v42 = vld [vmem:[%s1 + $0x18] sm:$0xff]
    %v43 = vld [vmem:[#allocation2] sm:$0x3]
    %v44 = vld [vmem:[#allocation3] sm:$0x3]
    %v45 = vld [vmem:[#allocation4] sm:$0x3]
    %vm46 = vcmask 261120
    %v48 = vsel %vm46, %v43, 0
    %50 = vmatprep.subr.mxu0 0.0
    %51 = vmatpush1.msra.mxu0 0.0
    %52 = vmatprep.subr.mxu0 0.0
    %53 = vmatpush1.msra.mxu0 0.0
    %54 = vmatprep.subr.mxu0 0.0
    %55 = vmatpush1.msra.mxu0 0.0
    %56 = vmatprep.subr.mxu0 0.0
    %57 = vmatpush1.msra.mxu0 0.0
    %58 = vmatprep.subr.mxu0 0.0
    %59 = vmatpush1.msra.mxu0 0.0
    %60 = vmatprep.subr.mxu0 0.0
    %61 = vmatpush1.msra.mxu0 0.0
    %62 = vmatprep.subr.mxu0 0.0
    %63 = vmatpush1.msra.mxu0 0.0
    %64 = vmatprep.subr.mxu0 0.0
    %65 = vmatpush1.msra.mxu0 0.0
    %66 = vmatprep.subr.mxu0 0.0
    %67 = vmatpush1.msra.mxu0 0.0
    %68 = vmatprep.subr.mxu0 0.0
    %69 = vmatpush1.msra.mxu0 0.0
    %70 = vmatprep.subr.mxu0 0.0
    %71 = vmatpush1.msra.mxu0 0.0
    %72 = vmatprep.subr.mxu0 0.0
    %73 = vmatpush1.msra.mxu0 0.0
    %74 = vmatprep.subr.mxu0 0.0
    %75 = vmatpush1.msra.mxu0 %v42
    %76 = vmatprep.subr.mxu0 0.0
    %77 = vmatpush1.msra.mxu0 %v41
    %78 = vmatprep.subr.mxu0 0.0
    %79 = vmatpush1.msra.mxu0 %v40
    %80 = vmatprep.subr.mxu0 0.0
    %81 = vmatpush1.msra.mxu0 %v39
    %82 = vmatprep.subr.mxu0 0.0
    %83 = vmatpush2.msra.mxu0 0.0
    %84 = vmatprep.subr.mxu0 0.0
    %85 = vmatpush2.msra.mxu0 0.0
    %86 = vmatprep.subr.mxu0 0.0
    %87 = vmatpush2.msra.mxu0 0.0
    %88 = vmatprep.subr.mxu0 0.0
    %89 = vmatpush2.msra.mxu0 0.0
    %90 = vmatprep.subr.mxu0 0.0
    %91 = vmatpush2.msra.mxu0 0.0
    %92 = vmatprep.subr.mxu0 0.0
    %93 = vmatpush2.msra.mxu0 0.0
    %94 = vmatprep.subr.mxu0 0.0
    %95 = vmatpush2.msra.mxu0 0.0
    %96 = vmatprep.subr.mxu0 0.0
    %97 = vmatpush2.msra.mxu0 0.0
    %98 = vmatprep.subr.mxu0 0.0
    %99 = vmatpush2.msra.mxu0 0.0
    %100 = vmatprep.subr.mxu0 0.0
    %101 = vmatpush2.msra.mxu0 0.0
    %102 = vmatprep.subr.mxu0 0.0
    %103 = vmatpush2.msra.mxu0 0.0
    %104 = vmatprep.subr.mxu0 0.0
    %105 = vmatpush2.msra.mxu0 0.0
    %106 = vmatprep.subr.mxu0 0.0
    %107 = vmatpush2.msra.mxu0 0.0
    %108 = vmatprep.subr.mxu0 0.0
    %109 = vmatpush2.msra.mxu0 0.0
    %110 = vmatprep.subr.mxu0 0.0
    %111 = vmatpush2.msra.mxu0 0.0
    %112 = vmatprep.subr.mxu0 0.0
    %113 = vmatpush2.msra.mxu0 0.0
    %114 = vmatprep.mubr.f32.mxu0 0.0
    %115 = vmatmul.mubr.f32.gmra.mxu0 %v48
    %v116 = vpop.f32.mrf.mxu0
    %v117 = vadd.f32 0.0, %v116
    %v118 = vpop.f32.mrf.mxu0
    %119 = vdwg.mxu0
    %v120 = vadd.f32 %v45, %v117
    %v121 = vxor.u32 %v120, 2147483648
    %v122 = vmul.f32 %v121, 1.442695
    %v123 = vpow.pop %v122
    %v124 = vadd.f32 %v123, 1.0
    %v125 = vrcp.pop %v124
    %v126 = vmul.f32 1.0, %v125
    %v127 = vtanh.pop %v120
    %129 = vrot.lane.b32.xlu0 %v44, 32
    %v130 = vpop.permute.xlu0 %129
    %v132 = vmul.f32 %v126, %v130
    %134 = vrot.lane.b32.xlu0 %v127, 64
    %v135 = vpop.permute.xlu0 %134
    %v137 = vmul.f32 %v126, %v135
    %139 = vrot.lane.b32.xlu0 %v137, 32
    %v140 = vpop.permute.xlu0 %139
    %v142 = vadd.f32 %v132, %v140
    %v143 = vtanh.pop %v142
    %145 = vrot.lane.b32.xlu0 %v143, 64
    %v146 = vpop.permute.xlu0 %145
    %v148 = vmul.f32 %v126, %v146
    %s149 = scalar_lea.vmem [#allocation4], 2
    %v150 = vld [vmem:[%s149] sm:$0x3]
    %152 = vrot.lane.b32.xlu0 %v148, 32
    %v153 = vpop.permute.xlu0 %152
    %v154 = vsel %vm46, %v153, 0
    %156 = vmatprep.subr.mxu0 0.0
    %157 = vmatpush1.msra.mxu0 0.0
    %158 = vmatprep.subr.mxu0 0.0
    %159 = vmatpush1.msra.mxu0 0.0
    %160 = vmatprep.subr.mxu0 0.0
    %161 = vmatpush1.msra.mxu0 0.0
    %162 = vmatprep.subr.mxu0 0.0
    %163 = vmatpush1.msra.mxu0 0.0
    %164 = vmatprep.subr.mxu0 0.0
    %165 = vmatpush1.msra.mxu0 0.0
    %166 = vmatprep.subr.mxu0 0.0
    %167 = vmatpush1.msra.mxu0 0.0
    %168 = vmatprep.subr.mxu0 0.0
    %169 = vmatpush1.msra.mxu0 0.0
    %170 = vmatprep.subr.mxu0 0.0
    %171 = vmatpush1.msra.mxu0 0.0
    %172 = vmatprep.subr.mxu0 0.0
    %173 = vmatpush1.msra.mxu0 0.0
    %174 = vmatprep.subr.mxu0 0.0
    %175 = vmatpush1.msra.mxu0 0.0
    %176 = vmatprep.subr.mxu0 0.0
    %177 = vmatpush1.msra.mxu0 0.0
    %178 = vmatprep.subr.mxu0 0.0
    %179 = vmatpush1.msra.mxu0 0.0
    %180 = vmatprep.subr.mxu0 0.0
    %181 = vmatpush1.msra.mxu0 %v42
    %182 = vmatprep.subr.mxu0 0.0
    %183 = vmatpush1.msra.mxu0 %v41
    %184 = vmatprep.subr.mxu0 0.0
    %185 = vmatpush1.msra.mxu0 %v40
    %186 = vmatprep.subr.mxu0 0.0
    %187 = vmatpush1.msra.mxu0 %v39
    %188 = vmatprep.subr.mxu0 0.0
    %189 = vmatpush2.msra.mxu0 0.0
    %190 = vmatprep.subr.mxu0 0.0
    %191 = vmatpush2.msra.mxu0 0.0
    %192 = vmatprep.subr.mxu0 0.0
    %193 = vmatpush2.msra.mxu0 0.0
    %194 = vmatprep.subr.mxu0 0.0
    %195 = vmatpush2.msra.mxu0 0.0
    %196 = vmatprep.subr.mxu0 0.0
    %197 = vmatpush2.msra.mxu0 0.0
    %198 = vmatprep.subr.mxu0 0.0
    %199 = vmatpush2.msra.mxu0 0.0
    %200 = vmatprep.subr.mxu0 0.0
    %201 = vmatpush2.msra.mxu0 0.0
    %202 = vmatprep.subr.mxu0 0.0
    %203 = vmatpush2.msra.mxu0 0.0
    %204 = vmatprep.subr.mxu0 0.0
    %205 = vmatpush2.msra.mxu0 0.0
    %206 = vmatprep.subr.mxu0 0.0
    %207 = vmatpush2.msra.mxu0 0.0
    %208 = vmatprep.subr.mxu0 0.0
    %209 = vmatpush2.msra.mxu0 0.0
    %210 = vmatprep.subr.mxu0 0.0
    %211 = vmatpush2.msra.mxu0 0.0
    %212 = vmatprep.subr.mxu0 0.0
    %213 = vmatpush2.msra.mxu0 0.0
    %214 = vmatprep.subr.mxu0 0.0
    %215 = vmatpush2.msra.mxu0 0.0
    %216 = vmatprep.subr.mxu0 0.0
    %217 = vmatpush2.msra.mxu0 0.0
    %218 = vmatprep.subr.mxu0 0.0
    %219 = vmatpush2.msra.mxu0 0.0
    %220 = vmatprep.mubr.f32.mxu0 0.0
    %221 = vmatmul.mubr.f32.gmra.mxu0 %v154
    %v222 = vpop.f32.mrf.mxu0
    %v223 = vadd.f32 0.0, %v222
    %v224 = vpop.f32.mrf.mxu0
    %225 = vdwg.mxu0
    %v226 = vadd.f32 %v150, %v223
    %v227 = vxor.u32 %v226, 2147483648
    %v228 = vmul.f32 %v227, 1.442695
    %v229 = vpow.pop %v228
    %v230 = vadd.f32 %v229, 1.0
    %v231 = vrcp.pop %v230
    %v232 = vmul.f32 1.0, %v231
    %v233 = vtanh.pop %v226
    %v234 = vmul.f32 %v232, %v142
    %236 = vrot.lane.b32.xlu0 %v233, 64
    %v237 = vpop.permute.xlu0 %236
    %v239 = vmul.f32 %v232, %v237
    %241 = vrot.lane.b32.xlu0 %v239, 32
    %v242 = vpop.permute.xlu0 %241
    %v244 = vadd.f32 %v234, %v242
    %v245 = vtanh.pop %v244
    %247 = vrot.lane.b32.xlu0 %v245, 64
    %v248 = vpop.permute.xlu0 %247
    %v250 = vmul.f32 %v232, %v248
    %s251 = scalar_lea.vmem [#allocation4], 4
    %v252 = vld [vmem:[%s251] sm:$0x3]
    %254 = vrot.lane.b32.xlu0 %v250, 32
    %v255 = vpop.permute.xlu0 %254
    %v256 = vsel %vm46, %v255, 0
    %258 = vmatprep.subr.mxu0 0.0
    %259 = vmatpush1.msra.mxu0 0.0
    %260 = vmatprep.subr.mxu0 0.0
    %261 = vmatpush1.msra.mxu0 0.0
    %262 = vmatprep.subr.mxu0 0.0
    %263 = vmatpush1.msra.mxu0 0.0
    %264 = vmatprep.subr.mxu0 0.0
    %265 = vmatpush1.msra.mxu0 0.0
    %266 = vmatprep.subr.mxu0 0.0
    %267 = vmatpush1.msra.mxu0 0.0
    %268 = vmatprep.subr.mxu0 0.0
    %269 = vmatpush1.msra.mxu0 0.0
    %270 = vmatprep.subr.mxu0 0.0
    %271 = vmatpush1.msra.mxu0 0.0
    %272 = vmatprep.subr.mxu0 0.0
    %273 = vmatpush1.msra.mxu0 0.0
    %274 = vmatprep.subr.mxu0 0.0
    %275 = vmatpush1.msra.mxu0 0.0
    %276 = vmatprep.subr.mxu0 0.0
    %277 = vmatpush1.msra.mxu0 0.0
    %278 = vmatprep.subr.mxu0 0.0
    %279 = vmatpush1.msra.mxu0 0.0
    %280 = vmatprep.subr.mxu0 0.0
    %281 = vmatpush1.msra.mxu0 0.0
    %282 = vmatprep.subr.mxu0 0.0
    %283 = vmatpush1.msra.mxu0 %v42
    %284 = vmatprep.subr.mxu0 0.0
    %285 = vmatpush1.msra.mxu0 %v41
    %286 = vmatprep.subr.mxu0 0.0
    %287 = vmatpush1.msra.mxu0 %v40
    %288 = vmatprep.subr.mxu0 0.0
    %289 = vmatpush1.msra.mxu0 %v39
    %290 = vmatprep.subr.mxu0 0.0
    %291 = vmatpush2.msra.mxu0 0.0
    %292 = vmatprep.subr.mxu0 0.0
    %293 = vmatpush2.msra.mxu0 0.0
    %294 = vmatprep.subr.mxu0 0.0
    %295 = vmatpush2.msra.mxu0 0.0
    %296 = vmatprep.subr.mxu0 0.0
    %297 = vmatpush2.msra.mxu0 0.0
    %298 = vmatprep.subr.mxu0 0.0
    %299 = vmatpush2.msra.mxu0 0.0
    %300 = vmatprep.subr.mxu0 0.0
    %301 = vmatpush2.msra.mxu0 0.0
    %302 = vmatprep.subr.mxu0 0.0
    %303 = vmatpush2.msra.mxu0 0.0
    %304 = vmatprep.subr.mxu0 0.0
    %305 = vmatpush2.msra.mxu0 0.0
    %306 = vmatprep.subr.mxu0 0.0
    %307 = vmatpush2.msra.mxu0 0.0
    %308 = vmatprep.subr.mxu0 0.0
    %309 = vmatpush2.msra.mxu0 0.0
    %310 = vmatprep.subr.mxu0 0.0
    %311 = vmatpush2.msra.mxu0 0.0
    %312 = vmatprep.subr.mxu0 0.0
    %313 = vmatpush2.msra.mxu0 0.0
    %314 = vmatprep.subr.mxu0 0.0
    %315 = vmatpush2.msra.mxu0 0.0
    %316 = vmatprep.subr.mxu0 0.0
    %317 = vmatpush2.msra.mxu0 0.0
    %318 = vmatprep.subr.mxu0 0.0
    %319 = vmatpush2.msra.mxu0 0.0
    %320 = vmatprep.subr.mxu0 0.0
    %321 = vmatpush2.msra.mxu0 0.0
    %322 = vmatprep.mubr.f32.mxu0 0.0
    %323 = vmatmul.mubr.f32.gmra.mxu0 %v256
    %v324 = vpop.f32.mrf.mxu0
    %v325 = vadd.f32 0.0, %v324
    %v326 = vpop.f32.mrf.mxu0
    %327 = vdwg.mxu0
    %v328 = vadd.f32 %v252, %v325
    %v329 = vxor.u32 %v328, 2147483648
    %v330 = vmul.f32 %v329, 1.442695
    %v331 = vpow.pop %v330
    %v332 = vadd.f32 %v331, 1.0
    %v333 = vrcp.pop %v332
    %v334 = vmul.f32 1.0, %v333
    %v335 = vtanh.pop %v328
    %v336 = vmul.f32 %v334, %v244
    %338 = vrot.lane.b32.xlu0 %v335, 64
    %v339 = vpop.permute.xlu0 %338
    %v341 = vmul.f32 %v334, %v339
    %343 = vrot.lane.b32.xlu0 %v341, 32
    %v344 = vpop.permute.xlu0 %343
    %v346 = vadd.f32 %v336, %v344
    %v347 = vtanh.pop %v346
    %349 = vrot.lane.b32.xlu0 %v347, 64
    %v350 = vpop.permute.xlu0 %349
    %v352 = vmul.f32 %v334, %v350
    %s353 = scalar_lea.vmem [#allocation4], 6
    %v354 = vld [vmem:[%s353] sm:$0x3]
    %356 = vrot.lane.b32.xlu0 %v352, 32
    %v357 = vpop.permute.xlu0 %356
    %v358 = vsel %vm46, %v357, 0
    %360 = vmatprep.subr.mxu0 0.0
    %361 = vmatpush1.msra.mxu0 0.0
    %362 = vmatprep.subr.mxu0 0.0
    %363 = vmatpush1.msra.mxu0 0.0
    %364 = vmatprep.subr.mxu0 0.0
    %365 = vmatpush1.msra.mxu0 0.0
    %366 = vmatprep.subr.mxu0 0.0
    %367 = vmatpush1.msra.mxu0 0.0
    %368 = vmatprep.subr.mxu0 0.0
    %369 = vmatpush1.msra.mxu0 0.0
    %370 = vmatprep.subr.mxu0 0.0
    %371 = vmatpush1.msra.mxu0 0.0
    %372 = vmatprep.subr.mxu0 0.0
    %373 = vmatpush1.msra.mxu0 0.0
    %374 = vmatprep.subr.mxu0 0.0
    %375 = vmatpush1.msra.mxu0 0.0
    %376 = vmatprep.subr.mxu0 0.0
    %377 = vmatpush1.msra.mxu0 0.0
    %378 = vmatprep.subr.mxu0 0.0
    %379 = vmatpush1.msra.mxu0 0.0
    %380 = vmatprep.subr.mxu0 0.0
    %381 = vmatpush1.msra.mxu0 0.0
    %382 = vmatprep.subr.mxu0 0.0
    %383 = vmatpush1.msra.mxu0 0.0
    %384 = vmatprep.subr.mxu0 0.0
    %385 = vmatpush1.msra.mxu0 %v42
    %386 = vmatprep.subr.mxu0 0.0
    %387 = vmatpush1.msra.mxu0 %v41
    %388 = vmatprep.subr.mxu0 0.0
    %389 = vmatpush1.msra.mxu0 %v40
    %390 = vmatprep.subr.mxu0 0.0
    %391 = vmatpush1.msra.mxu0 %v39
    %392 = vmatprep.subr.mxu0 0.0
    %393 = vmatpush2.msra.mxu0 0.0
    %394 = vmatprep.subr.mxu0 0.0
    %395 = vmatpush2.msra.mxu0 0.0
    %396 = vmatprep.subr.mxu0 0.0
    %397 = vmatpush2.msra.mxu0 0.0
    %398 = vmatprep.subr.mxu0 0.0
    %399 = vmatpush2.msra.mxu0 0.0
    %400 = vmatprep.subr.mxu0 0.0
    %401 = vmatpush2.msra.mxu0 0.0
    %402 = vmatprep.subr.mxu0 0.0
    %403 = vmatpush2.msra.mxu0 0.0
    %404 = vmatprep.subr.mxu0 0.0
    %405 = vmatpush2.msra.mxu0 0.0
    %406 = vmatprep.subr.mxu0 0.0
    %407 = vmatpush2.msra.mxu0 0.0
    %408 = vmatprep.subr.mxu0 0.0
    %409 = vmatpush2.msra.mxu0 0.0
    %410 = vmatprep.subr.mxu0 0.0
    %411 = vmatpush2.msra.mxu0 0.0
    %412 = vmatprep.subr.mxu0 0.0
    %413 = vmatpush2.msra.mxu0 0.0
    %414 = vmatprep.subr.mxu0 0.0
    %415 = vmatpush2.msra.mxu0 0.0
    %416 = vmatprep.subr.mxu0 0.0
    %417 = vmatpush2.msra.mxu0 0.0
    %418 = vmatprep.subr.mxu0 0.0
    %419 = vmatpush2.msra.mxu0 0.0
    %420 = vmatprep.subr.mxu0 0.0
    %421 = vmatpush2.msra.mxu0 0.0
    %422 = vmatprep.subr.mxu0 0.0
    %423 = vmatpush2.msra.mxu0 0.0
    %424 = vmatprep.mubr.f32.mxu0 0.0
    %425 = vmatmul.mubr.f32.gmra.mxu0 %v358
    %v426 = vpop.f32.mrf.mxu0
    %v427 = vadd.f32 0.0, %v426
    %v428 = vpop.f32.mrf.mxu0
    %429 = vdwg.mxu0
    %v430 = vadd.f32 %v354, %v427
    %v431 = vxor.u32 %v430, 2147483648
    %v432 = vmul.f32 %v431, 1.442695
    %v433 = vpow.pop %v432
    %v434 = vadd.f32 %v433, 1.0
    %v435 = vrcp.pop %v434
    %v436 = vmul.f32 1.0, %v435
    %v437 = vtanh.pop %v430
    %v438 = vmul.f32 %v436, %v346
    %440 = vrot.lane.b32.xlu0 %v437, 64
    %v441 = vpop.permute.xlu0 %440
    %v443 = vmul.f32 %v436, %v441
    %445 = vrot.lane.b32.xlu0 %v443, 32
    %v446 = vpop.permute.xlu0 %445
    %v448 = vadd.f32 %v438, %v446
    %v449 = vtanh.pop %v448
    %451 = vrot.lane.b32.xlu0 %v449, 64
    %v452 = vpop.permute.xlu0 %451
    %v454 = vmul.f32 %v436, %v452
    %s455 = scalar_lea.vmem [#allocation4], 8
    %v456 = vld [vmem:[%s455] sm:$0x3]
    %458 = vrot.lane.b32.xlu0 %v454, 32
    %v459 = vpop.permute.xlu0 %458
    %v460 = vsel %vm46, %v459, 0
    %462 = vmatprep.subr.mxu0 0.0
    %463 = vmatpush1.msra.mxu0 0.0
    %464 = vmatprep.subr.mxu0 0.0
    %465 = vmatpush1.msra.mxu0 0.0
    %466 = vmatprep.subr.mxu0 0.0
    %467 = vmatpush1.msra.mxu0 0.0
    %468 = vmatprep.subr.mxu0 0.0
    %469 = vmatpush1.msra.mxu0 0.0
    %470 = vmatprep.subr.mxu0 0.0
    %471 = vmatpush1.msra.mxu0 0.0
    %472 = vmatprep.subr.mxu0 0.0
    %473 = vmatpush1.msra.mxu0 0.0
    %474 = vmatprep.subr.mxu0 0.0
    %475 = vmatpush1.msra.mxu0 0.0
    %476 = vmatprep.subr.mxu0 0.0
    %477 = vmatpush1.msra.mxu0 0.0
    %478 = vmatprep.subr.mxu0 0.0
    %479 = vmatpush1.msra.mxu0 0.0
    %480 = vmatprep.subr.mxu0 0.0
    %481 = vmatpush1.msra.mxu0 0.0
    %482 = vmatprep.subr.mxu0 0.0
    %483 = vmatpush1.msra.mxu0 0.0
    %484 = vmatprep.subr.mxu0 0.0
    %485 = vmatpush1.msra.mxu0 0.0
    %486 = vmatprep.subr.mxu0 0.0
    %487 = vmatpush1.msra.mxu0 %v42
    %488 = vmatprep.subr.mxu0 0.0
    %489 = vmatpush1.msra.mxu0 %v41
    %490 = vmatprep.subr.mxu0 0.0
    %491 = vmatpush1.msra.mxu0 %v40
    %492 = vmatprep.subr.mxu0 0.0
    %493 = vmatpush1.msra.mxu0 %v39
    %494 = vmatprep.subr.mxu0 0.0
    %495 = vmatpush2.msra.mxu0 0.0
    %496 = vmatprep.subr.mxu0 0.0
    %497 = vmatpush2.msra.mxu0 0.0
    %498 = vmatprep.subr.mxu0 0.0
    %499 = vmatpush2.msra.mxu0 0.0
    %500 = vmatprep.subr.mxu0 0.0
    %501 = vmatpush2.msra.mxu0 0.0
    %502 = vmatprep.subr.mxu0 0.0
    %503 = vmatpush2.msra.mxu0 0.0
    %504 = vmatprep.subr.mxu0 0.0
    %505 = vmatpush2.msra.mxu0 0.0
    %506 = vmatprep.subr.mxu0 0.0
    %507 = vmatpush2.msra.mxu0 0.0
    %508 = vmatprep.subr.mxu0 0.0
    %509 = vmatpush2.msra.mxu0 0.0
    %510 = vmatprep.subr.mxu0 0.0
    %511 = vmatpush2.msra.mxu0 0.0
    %512 = vmatprep.subr.mxu0 0.0
    %513 = vmatpush2.msra.mxu0 0.0
    %514 = vmatprep.subr.mxu0 0.0
    %515 = vmatpush2.msra.mxu0 0.0
    %516 = vmatprep.subr.mxu0 0.0
    %517 = vmatpush2.msra.mxu0 0.0
    %518 = vmatprep.subr.mxu0 0.0
    %519 = vmatpush2.msra.mxu0 0.0
    %520 = vmatprep.subr.mxu0 0.0
    %521 = vmatpush2.msra.mxu0 0.0
    %522 = vmatprep.subr.mxu0 0.0
    %523 = vmatpush2.msra.mxu0 0.0
    %524 = vmatprep.subr.mxu0 0.0
    %525 = vmatpush2.msra.mxu0 0.0
    %526 = vmatprep.mubr.f32.mxu0 0.0
    %527 = vmatmul.mubr.f32.gmra.mxu0 %v460
    %v528 = vpop.f32.mrf.mxu0
    %v529 = vadd.f32 0.0, %v528
    %v530 = vpop.f32.mrf.mxu0
    %531 = vdwg.mxu0
    %v532 = vadd.f32 %v456, %v529
    %v533 = vxor.u32 %v532, 2147483648
    %v534 = vmul.f32 %v533, 1.442695
    %v535 = vpow.pop %v534
    %v536 = vadd.f32 %v535, 1.0
    %v537 = vrcp.pop %v536
    %v538 = vmul.f32 1.0, %v537
    %v539 = vtanh.pop %v532
    %v540 = vmul.f32 %v538, %v448
    %542 = vrot.lane.b32.xlu0 %v539, 64
    %v543 = vpop.permute.xlu0 %542
    %v545 = vmul.f32 %v538, %v543
    %547 = vrot.lane.b32.xlu0 %v545, 32
    %v548 = vpop.permute.xlu0 %547
    %v550 = vadd.f32 %v540, %v548
    %v551 = vtanh.pop %v550
    %553 = vrot.lane.b32.xlu0 %v551, 64
    %v554 = vpop.permute.xlu0 %553
    %v556 = vmul.f32 %v538, %v554
    %s557 = scalar_lea.vmem [#allocation4], 10
    %v558 = vld [vmem:[%s557] sm:$0x3]
    %560 = vrot.lane.b32.xlu0 %v556, 32
    %v561 = vpop.permute.xlu0 %560
    %v562 = vsel %vm46, %v561, 0
    %564 = vmatprep.subr.mxu0 0.0
    %565 = vmatpush1.msra.mxu0 0.0
    %566 = vmatprep.subr.mxu0 0.0
    %567 = vmatpush1.msra.mxu0 0.0
    %568 = vmatprep.subr.mxu0 0.0
    %569 = vmatpush1.msra.mxu0 0.0
    %570 = vmatprep.subr.mxu0 0.0
    %571 = vmatpush1.msra.mxu0 0.0
    %572 = vmatprep.subr.mxu0 0.0
    %573 = vmatpush1.msra.mxu0 0.0
    %574 = vmatprep.subr.mxu0 0.0
    %575 = vmatpush1.msra.mxu0 0.0
    %576 = vmatprep.subr.mxu0 0.0
    %577 = vmatpush1.msra.mxu0 0.0
    %578 = vmatprep.subr.mxu0 0.0
    %579 = vmatpush1.msra.mxu0 0.0
    %580 = vmatprep.subr.mxu0 0.0
    %581 = vmatpush1.msra.mxu0 0.0
    %582 = vmatprep.subr.mxu0 0.0
    %583 = vmatpush1.msra.mxu0 0.0
    %584 = vmatprep.subr.mxu0 0.0
    %585 = vmatpush1.msra.mxu0 0.0
    %586 = vmatprep.subr.mxu0 0.0
    %587 = vmatpush1.msra.mxu0 0.0
    %588 = vmatprep.subr.mxu0 0.0
    %589 = vmatpush1.msra.mxu0 %v42
    %590 = vmatprep.subr.mxu0 0.0
    %591 = vmatpush1.msra.mxu0 %v41
    %592 = vmatprep.subr.mxu0 0.0
    %593 = vmatpush1.msra.mxu0 %v40
    %594 = vmatprep.subr.mxu0 0.0
    %595 = vmatpush1.msra.mxu0 %v39
    %596 = vmatprep.subr.mxu0 0.0
    %597 = vmatpush2.msra.mxu0 0.0
    %598 = vmatprep.subr.mxu0 0.0
    %599 = vmatpush2.msra.mxu0 0.0
    %600 = vmatprep.subr.mxu0 0.0
    %601 = vmatpush2.msra.mxu0 0.0
    %602 = vmatprep.subr.mxu0 0.0
    %603 = vmatpush2.msra.mxu0 0.0
    %604 = vmatprep.subr.mxu0 0.0
    %605 = vmatpush2.msra.mxu0 0.0
    %606 = vmatprep.subr.mxu0 0.0
    %607 = vmatpush2.msra.mxu0 0.0
    %608 = vmatprep.subr.mxu0 0.0
    %609 = vmatpush2.msra.mxu0 0.0
    %610 = vmatprep.subr.mxu0 0.0
    %611 = vmatpush2.msra.mxu0 0.0
    %612 = vmatprep.subr.mxu0 0.0
    %613 = vmatpush2.msra.mxu0 0.0
    %614 = vmatprep.subr.mxu0 0.0
    %615 = vmatpush2.msra.mxu0 0.0
    %616 = vmatprep.subr.mxu0 0.0
    %617 = vmatpush2.msra.mxu0 0.0
    %618 = vmatprep.subr.mxu0 0.0
    %619 = vmatpush2.msra.mxu0 0.0
    %620 = vmatprep.subr.mxu0 0.0
    %621 = vmatpush2.msra.mxu0 0.0
    %622 = vmatprep.subr.mxu0 0.0
    %623 = vmatpush2.msra.mxu0 0.0
    %624 = vmatprep.subr.mxu0 0.0
    %625 = vmatpush2.msra.mxu0 0.0
    %626 = vmatprep.subr.mxu0 0.0
    %627 = vmatpush2.msra.mxu0 0.0
    %628 = vmatprep.mubr.f32.mxu0 0.0
    %629 = vmatmul.mubr.f32.gmra.mxu0 %v562
    %v630 = vpop.f32.mrf.mxu0
    %v631 = vadd.f32 0.0, %v630
    %v632 = vpop.f32.mrf.mxu0
    %633 = vdwg.mxu0
    %v634 = vadd.f32 %v558, %v631
    %v635 = vxor.u32 %v634, 2147483648
    %v636 = vmul.f32 %v635, 1.442695
    %v637 = vpow.pop %v636
    %v638 = vadd.f32 %v637, 1.0
    %v639 = vrcp.pop %v638
    %v640 = vmul.f32 1.0, %v639
    %v641 = vtanh.pop %v634
    %v642 = vmul.f32 %v640, %v550
    %644 = vrot.lane.b32.xlu0 %v641, 64
    %v645 = vpop.permute.xlu0 %644
    %v647 = vmul.f32 %v640, %v645
    %649 = vrot.lane.b32.xlu0 %v647, 32
    %v650 = vpop.permute.xlu0 %649
    %v652 = vadd.f32 %v642, %v650
    %v653 = vtanh.pop %v652
    %655 = vrot.lane.b32.xlu0 %v653, 64
    %v656 = vpop.permute.xlu0 %655
    %v658 = vmul.f32 %v640, %v656
    %s659 = scalar_lea.vmem [#allocation4], 12
    %v660 = vld [vmem:[%s659] sm:$0x3]
    %662 = vrot.lane.b32.xlu0 %v658, 32
    %v663 = vpop.permute.xlu0 %662
    %v664 = vsel %vm46, %v663, 0
    %666 = vmatprep.subr.mxu0 0.0
    %667 = vmatpush1.msra.mxu0 0.0
    %668 = vmatprep.subr.mxu0 0.0
    %669 = vmatpush1.msra.mxu0 0.0
    %670 = vmatprep.subr.mxu0 0.0
    %671 = vmatpush1.msra.mxu0 0.0
    %672 = vmatprep.subr.mxu0 0.0
    %673 = vmatpush1.msra.mxu0 0.0
    %674 = vmatprep.subr.mxu0 0.0
    %675 = vmatpush1.msra.mxu0 0.0
    %676 = vmatprep.subr.mxu0 0.0
    %677 = vmatpush1.msra.mxu0 0.0
    %678 = vmatprep.subr.mxu0 0.0
    %679 = vmatpush1.msra.mxu0 0.0
    %680 = vmatprep.subr.mxu0 0.0
    %681 = vmatpush1.msra.mxu0 0.0
    %682 = vmatprep.subr.mxu0 0.0
    %683 = vmatpush1.msra.mxu0 0.0
    %684 = vmatprep.subr.mxu0 0.0
    %685 = vmatpush1.msra.mxu0 0.0
    %686 = vmatprep.subr.mxu0 0.0
    %687 = vmatpush1.msra.mxu0 0.0
    %688 = vmatprep.subr.mxu0 0.0
    %689 = vmatpush1.msra.mxu0 0.0
    %690 = vmatprep.subr.mxu0 0.0
    %691 = vmatpush1.msra.mxu0 %v42
    %692 = vmatprep.subr.mxu0 0.0
    %693 = vmatpush1.msra.mxu0 %v41
    %694 = vmatprep.subr.mxu0 0.0
    %695 = vmatpush1.msra.mxu0 %v40
    %696 = vmatprep.subr.mxu0 0.0
    %697 = vmatpush1.msra.mxu0 %v39
    %698 = vmatprep.subr.mxu0 0.0
    %699 = vmatpush2.msra.mxu0 0.0
    %700 = vmatprep.subr.mxu0 0.0
    %701 = vmatpush2.msra.mxu0 0.0
    %702 = vmatprep.subr.mxu0 0.0
    %703 = vmatpush2.msra.mxu0 0.0
    %704 = vmatprep.subr.mxu0 0.0
    %705 = vmatpush2.msra.mxu0 0.0
    %706 = vmatprep.subr.mxu0 0.0
    %707 = vmatpush2.msra.mxu0 0.0
    %708 = vmatprep.subr.mxu0 0.0
    %709 = vmatpush2.msra.mxu0 0.0
    %710 = vmatprep.subr.mxu0 0.0
    %711 = vmatpush2.msra.mxu0 0.0
    %712 = vmatprep.subr.mxu0 0.0
    %713 = vmatpush2.msra.mxu0 0.0
    %714 = vmatprep.subr.mxu0 0.0
    %715 = vmatpush2.msra.mxu0 0.0
    %716 = vmatprep.subr.mxu0 0.0
    %717 = vmatpush2.msra.mxu0 0.0
    %718 = vmatprep.subr.mxu0 0.0
    %719 = vmatpush2.msra.mxu0 0.0
    %720 = vmatprep.subr.mxu0 0.0
    %721 = vmatpush2.msra.mxu0 0.0
    %722 = vmatprep.subr.mxu0 0.0
    %723 = vmatpush2.msra.mxu0 0.0
    %724 = vmatprep.subr.mxu0 0.0
    %725 = vmatpush2.msra.mxu0 0.0
    %726 = vmatprep.subr.mxu0 0.0
    %727 = vmatpush2.msra.mxu0 0.0
    %728 = vmatprep.subr.mxu0 0.0
    %729 = vmatpush2.msra.mxu0 0.0
    %730 = vmatprep.mubr.f32.mxu0 0.0
    %731 = vmatmul.mubr.f32.gmra.mxu0 %v664
    %v732 = vpop.f32.mrf.mxu0
    %v733 = vadd.f32 0.0, %v732
    %v734 = vpop.f32.mrf.mxu0
    %735 = vdwg.mxu0
    %v736 = vadd.f32 %v660, %v733
    %v737 = vxor.u32 %v736, 2147483648
    %v738 = vmul.f32 %v737, 1.442695
    %v739 = vpow.pop %v738
    %v740 = vadd.f32 %v739, 1.0
    %v741 = vrcp.pop %v740
    %v742 = vmul.f32 1.0, %v741
    %v743 = vtanh.pop %v736
    %v744 = vmul.f32 %v742, %v652
    %746 = vrot.lane.b32.xlu0 %v743, 64
    %v747 = vpop.permute.xlu0 %746
    %v749 = vmul.f32 %v742, %v747
    %751 = vrot.lane.b32.xlu0 %v749, 32
    %v752 = vpop.permute.xlu0 %751
    %v754 = vadd.f32 %v744, %v752
    %v755 = vtanh.pop %v754
    %757 = vrot.lane.b32.xlu0 %v755, 64
    %v758 = vpop.permute.xlu0 %757
    %v760 = vmul.f32 %v742, %v758
    %s761 = scalar_lea.vmem [#allocation4], 14
    %v762 = vld [vmem:[%s761] sm:$0x3]
    %764 = vrot.lane.b32.xlu0 %v760, 32
    %v765 = vpop.permute.xlu0 %764
    %v766 = vsel %vm46, %v765, 0
    %768 = vmatprep.subr.mxu0 0.0
    %769 = vmatpush1.msra.mxu0 0.0
    %770 = vmatprep.subr.mxu0 0.0
    %771 = vmatpush1.msra.mxu0 0.0
    %772 = vmatprep.subr.mxu0 0.0
    %773 = vmatpush1.msra.mxu0 0.0
    %774 = vmatprep.subr.mxu0 0.0
    %775 = vmatpush1.msra.mxu0 0.0
    %776 = vmatprep.subr.mxu0 0.0
    %777 = vmatpush1.msra.mxu0 0.0
    %778 = vmatprep.subr.mxu0 0.0
    %779 = vmatpush1.msra.mxu0 0.0
    %780 = vmatprep.subr.mxu0 0.0
    %781 = vmatpush1.msra.mxu0 0.0
    %782 = vmatprep.subr.mxu0 0.0
    %783 = vmatpush1.msra.mxu0 0.0
    %784 = vmatprep.subr.mxu0 0.0
    %785 = vmatpush1.msra.mxu0 0.0
    %786 = vmatprep.subr.mxu0 0.0
    %787 = vmatpush1.msra.mxu0 0.0
    %788 = vmatprep.subr.mxu0 0.0
    %789 = vmatpush1.msra.mxu0 0.0
    %790 = vmatprep.subr.mxu0 0.0
    %791 = vmatpush1.msra.mxu0 0.0
    %792 = vmatprep.subr.mxu0 0.0
    %793 = vmatpush1.msra.mxu0 %v42
    %794 = vmatprep.subr.mxu0 0.0
    %795 = vmatpush1.msra.mxu0 %v41
    %796 = vmatprep.subr.mxu0 0.0
    %797 = vmatpush1.msra.mxu0 %v40
    %798 = vmatprep.subr.mxu0 0.0
    %799 = vmatpush1.msra.mxu0 %v39
    %800 = vmatprep.subr.mxu0 0.0
    %801 = vmatpush2.msra.mxu0 0.0
    %802 = vmatprep.subr.mxu0 0.0
    %803 = vmatpush2.msra.mxu0 0.0
    %804 = vmatprep.subr.mxu0 0.0
    %805 = vmatpush2.msra.mxu0 0.0
    %806 = vmatprep.subr.mxu0 0.0
    %807 = vmatpush2.msra.mxu0 0.0
    %808 = vmatprep.subr.mxu0 0.0
    %809 = vmatpush2.msra.mxu0 0.0
    %810 = vmatprep.subr.mxu0 0.0
    %811 = vmatpush2.msra.mxu0 0.0
    %812 = vmatprep.subr.mxu0 0.0
    %813 = vmatpush2.msra.mxu0 0.0
    %814 = vmatprep.subr.mxu0 0.0
    %815 = vmatpush2.msra.mxu0 0.0
    %816 = vmatprep.subr.mxu0 0.0
    %817 = vmatpush2.msra.mxu0 0.0
    %818 = vmatprep.subr.mxu0 0.0
    %819 = vmatpush2.msra.mxu0 0.0
    %820 = vmatprep.subr.mxu0 0.0
    %821 = vmatpush2.msra.mxu0 0.0
    %822 = vmatprep.subr.mxu0 0.0
    %823 = vmatpush2.msra.mxu0 0.0
    %824 = vmatprep.subr.mxu0 0.0
    %825 = vmatpush2.msra.mxu0 0.0
    %826 = vmatprep.subr.mxu0 0.0
    %827 = vmatpush2.msra.mxu0 0.0
    %828 = vmatprep.subr.mxu0 0.0
    %829 = vmatpush2.msra.mxu0 0.0
    %830 = vmatprep.subr.mxu0 0.0
    %831 = vmatpush2.msra.mxu0 0.0
    %832 = vmatprep.mubr.f32.mxu0 0.0
    %833 = vmatmul.mubr.f32.gmra.mxu0 %v766
    %v834 = vpop.f32.mrf.mxu0
    %v835 = vadd.f32 0.0, %v834
    %v836 = vpop.f32.mrf.mxu0
    %837 = vdwg.mxu0
    %v838 = vadd.f32 %v762, %v835
    %v839 = vxor.u32 %v838, 2147483648
    %v840 = vmul.f32 %v839, 1.442695
    %v841 = vpow.pop %v840
    %v842 = vadd.f32 %v841, 1.0
    %v843 = vrcp.pop %v842
    %v844 = vmul.f32 1.0, %v843
    %v845 = vtanh.pop %v838
    %v846 = vmul.f32 %v844, %v754
    %848 = vrot.lane.b32.xlu0 %v845, 64
    %v849 = vpop.permute.xlu0 %848
    %v851 = vmul.f32 %v844, %v849
    %853 = vrot.lane.b32.xlu0 %v851, 32
    %v854 = vpop.permute.xlu0 %853
    %v856 = vadd.f32 %v846, %v854
    %v857 = vtanh.pop %v856
    %859 = vrot.lane.b32.xlu0 %v857, 64
    %v860 = vpop.permute.xlu0 %859
    %v862 = vmul.f32 %v844, %v860
    %864 = vrot.lane.b32.xlu0 %v862, 32
    %v865 = vpop.permute.xlu0 %864
    %vm867 = vcmask 254976
    %868 = vst.msk [vmem:[#allocation2] sm:$0x3] %vm867, %v865
    %870 = vrot.lane.b32.xlu0 %v856, 96
    %v871 = vpop.permute.xlu0 %870
    %873 = vst.msk [vmem:[#allocation3] sm:$0x3] %vm867, %v871
    // Predicated region
    $region26: #{tpu_custom_call.1} parent=1 // pred_check
      %p874 = pneg %p32
    $region27: #{tpu_custom_call.1} parent=1 // pred_check_branch
      %876 = sbr.rel (%p874) target = $region29
    $region28: #{tpu_custom_call.1} parent=1 // pred_region
      %v877 = vld [vmem:[#allocation2] sm:$0x3]
      %v878 = vld [vmem:[%s2] sm:$0xff]
      %v879 = vld [vmem:[%s2 + $0x8] sm:$0xff]
      %v880 = vld [vmem:[%s2 + $0x10] sm:$0xff]
      %v881 = vld [vmem:[%s2 + $0x18] sm:$0xff]
      %v882 = vld [vmem:[%s3] sm:$0x1]
      %v884 = vlaneseq
      %v885 = vshrl.u32 %v884, 7
      %v886 = vsub.s32 0, %v885
      %v887 = vrot.slane %v882, %v886
      %v890 = vsel %vm46, %v877, 0
      %892 = vmatprep.subr.mxu0 0.0
      %893 = vmatpush1.msra.mxu0 0.0
      %894 = vmatprep.subr.mxu0 0.0
      %895 = vmatpush1.msra.mxu0 0.0
      %896 = vmatprep.subr.mxu0 0.0
      %897 = vmatpush1.msra.mxu0 0.0
      %898 = vmatprep.subr.mxu0 0.0
      %899 = vmatpush1.msra.mxu0 0.0
      %900 = vmatprep.subr.mxu0 0.0
      %901 = vmatpush1.msra.mxu0 0.0
      %902 = vmatprep.subr.mxu0 0.0
      %903 = vmatpush1.msra.mxu0 0.0
      %904 = vmatprep.subr.mxu0 0.0
      %905 = vmatpush1.msra.mxu0 0.0
      %906 = vmatprep.subr.mxu0 0.0
      %907 = vmatpush1.msra.mxu0 0.0
      %908 = vmatprep.subr.mxu0 0.0
      %909 = vmatpush1.msra.mxu0 0.0
      %910 = vmatprep.subr.mxu0 0.0
      %911 = vmatpush1.msra.mxu0 0.0
      %912 = vmatprep.subr.mxu0 0.0
      %913 = vmatpush1.msra.mxu0 0.0
      %914 = vmatprep.subr.mxu0 0.0
      %915 = vmatpush1.msra.mxu0 0.0
      %916 = vmatprep.subr.mxu0 0.0
      %917 = vmatpush1.msra.mxu0 %v881
      %918 = vmatprep.subr.mxu0 0.0
      %919 = vmatpush1.msra.mxu0 %v880
      %920 = vmatprep.subr.mxu0 0.0
      %921 = vmatpush1.msra.mxu0 %v879
      %922 = vmatprep.subr.mxu0 0.0
      %923 = vmatpush1.msra.mxu0 %v878
      %924 = vmatprep.subr.mxu0 0.0
      %925 = vmatpush2.msra.mxu0 0.0
      %926 = vmatprep.subr.mxu0 0.0
      %927 = vmatpush2.msra.mxu0 0.0
      %928 = vmatprep.subr.mxu0 0.0
      %929 = vmatpush2.msra.mxu0 0.0
      %930 = vmatprep.subr.mxu0 0.0
      %931 = vmatpush2.msra.mxu0 0.0
      %932 = vmatprep.subr.mxu0 0.0
      %933 = vmatpush2.msra.mxu0 0.0
      %934 = vmatprep.subr.mxu0 0.0
      %935 = vmatpush2.msra.mxu0 0.0
      %936 = vmatprep.subr.mxu0 0.0
      %937 = vmatpush2.msra.mxu0 0.0
      %938 = vmatprep.subr.mxu0 0.0
      %939 = vmatpush2.msra.mxu0 0.0
      %940 = vmatprep.subr.mxu0 0.0
      %941 = vmatpush2.msra.mxu0 0.0
      %942 = vmatprep.subr.mxu0 0.0
      %943 = vmatpush2.msra.mxu0 0.0
      %944 = vmatprep.subr.mxu0 0.0
      %945 = vmatpush2.msra.mxu0 0.0
      %946 = vmatprep.subr.mxu0 0.0
      %947 = vmatpush2.msra.mxu0 0.0
      %948 = vmatprep.subr.mxu0 0.0
      %949 = vmatpush2.msra.mxu0 0.0
      %950 = vmatprep.subr.mxu0 0.0
      %951 = vmatpush2.msra.mxu0 0.0
      %952 = vmatprep.subr.mxu0 0.0
      %953 = vmatpush2.msra.mxu0 0.0
      %954 = vmatprep.subr.mxu0 0.0
      %955 = vmatpush2.msra.mxu0 0.0
      %956 = vmatprep.mubr.f32.mxu0 0.0
      %957 = vmatmul.mubr.f32.gmra.mxu0 %v890
      %v958 = vpop.f32.mrf.mxu0
      %v959 = vadd.f32 %v887, %v958
      %v960 = vpop.f32.mrf.mxu0
      %961 = vdwg.mxu0
      %vm962 = vcmask 25600
      %963 = vst.msk [vmem:[#allocation7] sm:$0x3] %vm962, %v959
    $region29: #{tpu_custom_call.1} parent=1 // pred_fallthru
      _
    // Predicated region
    $region30: #{tpu_custom_call.1} parent=1 // pred_check
      _
    $region31: #{tpu_custom_call.1} parent=1 // pred_check_branch
      %965 = sbr.rel (0) target = $region33
    $region32: #{tpu_custom_call.1} parent=1 // pred_region
      %s967 = ssub.s32 32, 32
      %968 = vsyncadd [#allocation6], %s967
      %s970 = sshll.u32 [#allocation7], 4
      %s971 = int_to_ptr.vmem [resolvable:$true] %s970
      %973 = dma.vmem_to_hbm [thread:$0]  %s971, 32, %s4, [#allocation6]
    $region33: #{tpu_custom_call.1} parent=1 // pred_fallthru
      _
    // Predicated region
    $region34: #{tpu_custom_call.1} parent=1 // pred_check
      _
    $region35: #{tpu_custom_call.1} parent=1 // pred_check_branch
      %975 = sbr.rel (0) target = $region37
    $region36: #{tpu_custom_call.1} parent=1 // pred_region
      %976 = dma.done [#allocation6], 32
    $region37: #{tpu_custom_call.1} parent=1 // pred_fallthru
      _
    %977 = vsyncpa [#allocation5], 1
    %978 = vsyncpa [#allocation6], 1

</llo_original>
